<compile_context>
chip_gen: v5e
topology: v5e:2x2
jax: 0.10.0
libtpu: 0.0.40
codegen_flags: <defaults>
</compile_context>

<pallas_src>
import functools

import jax
import jax.numpy as jnp
import numpy as np
from jax.experimental import pallas as pl
from jax.experimental.pallas import tpu as pltpu


def _axis_pool_weights(scale, trans, n):
    """Bilinear sampling weights for one axis, averaged over the n output positions
    (i.e. already fused with the global average pool), evaluated at the n source positions.

    scale, trans : (TB, K, 1) affine parameters for this axis (per batch, per class).
    n            : number of positions along this axis (source size == output size).
    Returns (TB, K, n) averaged weights.
    Implements affine_grid(align_corners=False) + grid_sample(bilinear, border).
    """
    f32 = jnp.float32
    o = jax.lax.broadcasted_iota(jnp.int32, (1, 1, n, 1), 2).astype(f32)
    base = (2.0 * o + 1.0) / n - 1.0                              # normalized output coords
    g = scale[..., None] * base + trans[..., None]                # (TB, K, n, 1) grid coords
    src = jnp.clip(((g + 1.0) * n - 1.0) * 0.5, 0.0, n - 1.0)     # unnormalize + border clamp
    i0 = jnp.floor(src)
    frac = src - i0
    i1 = jnp.minimum(i0 + 1.0, n - 1.0)
    p = jax.lax.broadcasted_iota(jnp.int32, (1, 1, 1, n), 3).astype(f32)   # source index
    # NOTE: relies on exact fp32 equality of small integers (keep these in fp32).
    w = (jnp.where(p == i0, 1.0 - frac, 0.0)
         + jnp.where(p == i1, frac, 0.0))                         # (TB, K, n_out, n_src)
    return jnp.mean(w, axis=2)                                    # (TB, K, n_src)


def stb_kernel(feat_ref, a1w_ref, a1b_ref, a2w_ref, a2b_ref, stw_ref, stb_ref,
               fcw_ref, fcb_ref, out_ref, *, K, H, W):
    f32 = jnp.float32
    feat = feat_ref[...]                                   # (TB, C, S), native dtype
    TB, C, S = feat.shape

    # Class-independent GAP from the resident block (cheap lane reduction, f32 accumulate).
    gap = jnp.mean(feat.astype(f32), axis=-1)              # (TB, C)

    # ---- ChannelAttn for all K classes: one wide conv1 + one block-diagonal conv2 ----
    h1 = jnp.maximum(
        jnp.dot(gap, a1w_ref[0].astype(f32), preferred_element_type=f32)
        + a1b_ref[0].astype(f32), 0.0)                     # (TB, K*cr)
    att_flat = jax.nn.sigmoid(
        jnp.dot(h1, a2w_ref[0].astype(f32), preferred_element_type=f32)
        + a2b_ref[0].astype(f32))                          # (TB, K*C), order k*C + c

    # mean_hw(stn_feature) == gap * (att + 1)  (attention is constant over H, W).
    gtile = jnp.concatenate([gap] * K, axis=1)             # (TB, K*C)
    pooled_flat = gtile * (att_flat + 1.0)
    theta_flat = (jnp.dot(pooled_flat, stw_ref[0].astype(f32), preferred_element_type=f32)
                  + stb_ref[0].astype(f32))                # (TB, 4*K), order k*4 + j

    # Unflatten with lane slices (aligned when C % 128 == 0) + a single concatenate each.
    att = jnp.concatenate(
        [att_flat[:, k * C:(k + 1) * C][:, None, :] for k in range(K)], axis=1)   # (TB, K, C)
    theta = jnp.concatenate(
        [theta_flat[:, 4 * k:4 * (k + 1)][:, None, :] for k in range(K)], axis=1)  # (TB, K, 4)

    # theta nonlinearities on the whole tile: lanes {0,1} -> sigmoid scales, {2,3} -> tanh shifts.
    lane = jax.lax.broadcasted_iota(jnp.int32, theta.shape, 2)
    act = jnp.where(lane < 2, jax.nn.sigmoid(theta), jnp.tanh(theta))
    s_x, s_y = act[:, :, 0:1], act[:, :, 1:2]
    t_x, t_y = act[:, :, 2:3], act[:, :, 3:4]

    # ---- separable pooled bilinear weights, then expansion to the flattened H*W axis ----
    wy = _axis_pool_weights(s_y, t_y, H)                   # (TB, K, H)
    wx = _axis_pool_weights(s_x, t_x, W)                   # (TB, K, W)

    # One-hot "row-of-s" / "col-of-s" expansion matrices (exact fp32 integer arithmetic:
    # |err| << 0.5/W for any realistic pooling size, so the floor/compare are exact).
    s_f = jax.lax.broadcasted_iota(jnp.int32, (TB, 1, S), 2).astype(f32)
    row_of_s = jnp.floor((s_f + 0.5) * (1.0 / W))          # (TB, 1, S)
    col_of_s = s_f - row_of_s * W
    h_f = jax.lax.broadcasted_iota(jnp.int32, (TB, H, 1), 1).astype(f32)
    w_f = jax.lax.broadcasted_iota(jnp.int32, (TB, W, 1), 1).astype(f32)
    eh = (h_f == row_of_s).astype(f32)                     # (TB, H, S)
    ew = (w_f == col_of_s).astype(f32)                     # (TB, W, S)

    wy_s = jnp.einsum('bkh,bhs->bks', wy, eh, preferred_element_type=f32)
    wx_s = jnp.einsum('bkw,bws->bks', wx, ew, preferred_element_type=f32)
    kmat = wy_s * wx_s                                     # (TB, K, S) pooled bilinear weights

    # ---- fused affine_grid + grid_sample(border) + full-map AvgPool2d: one MXU matmul ----
    # feat stays in its native dtype (bf16-ready); accumulation is f32.
    wsum = jnp.einsum('bks,bcs->bkc', kmat.astype(feat.dtype), feat,
                      preferred_element_type=f32)          # (TB, K, C)

    # pooled_sub = (att + 1) * wsum ; pred = pooled_sub @ fc_w + fc_b  (fused)
    m = (att + 1.0) * fcw_ref[...].astype(f32)             # (TB, K, C)
    pred = jnp.sum(wsum * m, axis=-1) + fcb_ref[0].astype(f32)   # (TB, K)
    out_ref[...] = pred[None].astype(out_ref.dtype)        # block (1, TB, K)


def _block_diag(w):
    """(nblk, K, a, b) -> (nblk, K*a, K*b) with the per-class (a, b) blocks on the diagonal."""
    nblk, K, a, b = w.shape
    eye = jnp.eye(K, dtype=w.dtype)
    return jnp.einsum('nkab,kl->nkalb', w, eye).reshape(nblk, K * a, K * b)


def spatial_transform_block(features, params, pooling_size, block_classes=8,
                            batch_tile=None, vmem_limit_bytes=48 * 1024 * 1024):
    """Forward pass of SpatialTransformBlock.  features: (bs, C, H, W) NCHW."""
    bs, C, H, W = features.shape
    assert H == pooling_size and W == pooling_size // 2
    S = H * W
    nc, cr = params["att1_w"].shape[0], params["att1_w"].shape[1]

    # K classes per class block (block-diagonal weights grow as K^2 -> keep K moderate).
    K = min(block_classes, nc)
    nblk = pl.cdiv(nc, K)
    nc_pad = nblk * K

    def padc(x):                              # pad the class axis to a multiple of K
        if nc_pad == nc:
            return x
        return jnp.pad(x, [(0, nc_pad - nc)] + [(0, 0)] * (x.ndim - 1))

    a1w = padc(params["att1_w"])              # (ncp, cr, C)   torch Conv2d (out, in) layout
    a1b = padc(params["att1_b"])              # (ncp, cr)
    a2w = padc(params["att2_w"])              # (ncp, C, cr)
    a2b = padc(params["att2_b"])              # (ncp, C)
    stw = padc(params["stn_w"])               # (ncp, 4, C)    torch Linear (out, in) layout
    stb = padc(params["stn_b"])               # (ncp, 4)
    fcw = padc(params["fc_w"])                # (ncp, 1, C)
    fcb = padc(params["fc_b"])                # (ncp, 1)

    # (in, out) layouts; conv1 packed wide, conv2 / stn packed block-diagonal per class block.
    a1w_p = jnp.transpose(a1w.reshape(nblk, K, cr, C), (0, 3, 1, 2)).reshape(nblk, C, K * cr)
    a2w_p = _block_diag(jnp.transpose(a2w, (0, 2, 1)).reshape(nblk, K, cr, C))   # (nblk, K*cr, K*C)
    stw_p = _block_diag(jnp.transpose(stw, (0, 2, 1)).reshape(nblk, K, C, 4))    # (nblk, K*C, 4*K)
    fcw_p = fcw.reshape(nblk, K, C)

    a1b_p = a1b.reshape(nblk, 1, K * cr)      # separate, lane-aligned bias inputs
    a2b_p = a2b.reshape(nblk, 1, K * C)
    stb_p = stb.reshape(nblk, 1, 4 * K)
    fcb_p = fcb.reshape(nblk, 1, K)

    # Batch tiling: keep the per-step feature tile around <= 8 MiB (v7x-safe budget).
    if batch_tile is None:
        row_bytes = C * S * features.dtype.itemsize
        batch_tile = max(8, min(512, ((8 * 1024 * 1024) // max(row_bytes, 1)) // 8 * 8))
    if bs <= batch_tile:
        TB, nbt, bs_pad = bs, 1, bs
    else:
        TB = batch_tile
        nbt = pl.cdiv(bs, TB)
        bs_pad = nbt * TB

    # NCHW -> (bs, C, H*W) is a FREE reshape (no HBM transpose of the feature map).
    feat = features.reshape(bs, C, S)
    if bs_pad != bs:
        feat = jnp.pad(feat, ((0, bs_pad - bs), (0, 0), (0, 0)))

    kernel = functools.partial(stb_kernel, K=K, H=H, W=W)
    out = pl.pallas_call(
        kernel,
        out_shape=jax.ShapeDtypeStruct((nblk, bs_pad, K), jnp.float32),
        grid=(nbt, nblk),          # batch outer: features streamed from HBM exactly once
        in_specs=[
            pl.BlockSpec((TB, C, S), lambda i, j: (i, 0, 0)),          # features (bs, C, S)
            pl.BlockSpec((1, C, K * cr), lambda i, j: (j, 0, 0)),      # att conv1 weights (wide)
            pl.BlockSpec((1, 1, K * cr), lambda i, j: (j, 0, 0)),      # att conv1 bias
            pl.BlockSpec((1, K * cr, K * C), lambda i, j: (j, 0, 0)),  # att conv2 (block-diag)
            pl.BlockSpec((1, 1, K * C), lambda i, j: (j, 0, 0)),       # att conv2 bias
            pl.BlockSpec((1, K * C, 4 * K), lambda i, j: (j, 0, 0)),   # stn weights (block-diag)
            pl.BlockSpec((1, 1, 4 * K), lambda i, j: (j, 0, 0)),       # stn bias
            pl.BlockSpec((1, K, C), lambda i, j: (j, 0, 0)),           # fc weights
            pl.BlockSpec((1, 1, K), lambda i, j: (j, 0, 0)),           # fc bias
        ],
        out_specs=pl.BlockSpec((1, TB, K), lambda i, j: (j, i, 0)),
        compiler_params=pltpu.CompilerParams(
            dimension_semantics=("parallel", "parallel"),
            vmem_limit_bytes=vmem_limit_bytes,
        ),
    )(feat, a1w_p, a1b_p, a2w_p, a2b_p, stw_p, stb_p, fcw_p, fcb_p)

    # (nblk, bs_pad, K) -> (bs, nc); padded batch rows / classes (if any) are sliced away.
    out = jnp.transpose(out, (1, 0, 2)).reshape(bs_pad, nc_pad)
    return out[:bs, :nc]


def init_params(key, num_classes, channels, reduction=16):
    """Deterministic PyTorch-style (uniform +-1/sqrt(fan_in)) init; torch (out, in) layout."""
    assert channels % reduction == 0
    cr = channels // reduction
    ks = jax.random.split(key, 8)

    def u(k, shape, fan_in):
        b = 1.0 / np.sqrt(fan_in)
        return jax.random.uniform(k, shape, jnp.float32, -b, b)

    return {
        "att1_w": u(ks[0], (num_classes, cr, channels), channels),
        "att1_b": u(ks[1], (num_classes, cr), channels),
        "att2_w": u(ks[2], (num_classes, channels, cr), cr),
        "att2_b": u(ks[3], (num_classes, channels), cr),
        "stn_w": u(ks[4], (num_classes, 4, channels), channels),
        "stn_b": u(ks[5], (num_classes, 4), channels),
        "fc_w": u(ks[6], (num_classes, 1, channels), channels),
        "fc_b": u(ks[7], (num_classes, 1), channels),
    }


def reference_forward(features, params, pooling_size):
    """Pure-JAX reference with explicit affine_grid + bilinear border grid_sample."""
    bs, C, H, W = features.shape
    nc = params["att1_w"].shape[0]
    preds = []
    for i in range(nc):
        w1, b1 = params["att1_w"][i], params["att1_b"][i]
        w2, b2 = params["att2_w"][i], params["att2_b"][i]
        sw, sb = params["stn_w"][i], params["stn_b"][i]
        fw, fb = params["fc_w"][i], params["fc_b"][i]

        gap = features.mean(axis=(2, 3))
        h1 = jax.nn.relu(gap @ w1.T + b1)
        att = jax.nn.sigmoid(h1 @ w2.T + b2)
        stn_feat = features * att[:, :, None, None] + features
        theta = stn_feat.mean(axis=(2, 3)) @ sw.T + sb
        sx, sy = jax.nn.sigmoid(theta[:, 0]), jax.nn.sigmoid(theta[:, 1])
        tx, ty = jnp.tanh(theta[:, 2]), jnp.tanh(theta[:, 3])

        xb = (2.0 * jnp.arange(W) + 1.0) / W - 1.0
        yb = (2.0 * jnp.arange(H) + 1.0) / H - 1.0
        gx = sx[:, None] * xb[None, :] + tx[:, None]
        gy = sy[:, None] * yb[None, :] + ty[:, None]
        ix = jnp.clip(((gx + 1.0) * W - 1.0) / 2.0, 0.0, W - 1.0)
        iy = jnp.clip(((gy + 1.0) * H - 1.0) / 2.0, 0.0, H - 1.0)
        ix0 = jnp.floor(ix); fx = ix - ix0
        iy0 = jnp.floor(iy); fy = iy - iy0
        ix0i = ix0.astype(jnp.int32); ix1i = jnp.minimum(ix0i + 1, W - 1)
        iy0i = iy0.astype(jnp.int32); iy1i = jnp.minimum(iy0i + 1, H - 1)

        sub = []
        for b in range(bs):
            f = stn_feat[b]                                  # (C, H, W)
            r0 = f[:, iy0i[b], :]
            r1 = f[:, iy1i[b], :]
            rowmix = r0 * (1 - fy[b])[None, :, None] + r1 * fy[b][None, :, None]
            c0 = rowmix[:, :, ix0i[b]]
            c1 = rowmix[:, :, ix1i[b]]
            sub.append(c0 * (1 - fx[b])[None, None, :] + c1 * fx[b][None, None, :])
        sub = jnp.stack(sub)                                 # (bs, C, H, W)
        preds.append(sub.mean(axis=(2, 3)) @ fw.T + fb)      # (bs, 1)
    return jnp.concatenate(preds, axis=1)


if __name__ == "__main__":
    num_classes, pooling_size, channels = 4, 8, 128
    bs = 2
    H, W = pooling_size, pooling_size // 2                   # (8, 4)

    key = jax.random.PRNGKey(0)
    k_feat, k_par = jax.random.split(key)
    features = jax.random.normal(k_feat, (bs, channels, H, W), jnp.float32)
    params = init_params(k_par, num_classes, channels)

    out = spatial_transform_block(features, params, pooling_size)
    out = jax.block_until_ready(out)                          # (bs, num_classes)

    ref = reference_forward(features, params, pooling_size)
    np.testing.assert_allclose(np.asarray(out), np.asarray(ref), rtol=2e-3, atol=2e-3)
    print("KERNEL_OK")
</pallas_src>

<mosaic_0001>
module attributes {stable_mosaic.version = 11 : i64} {
  func.func @stb_kernel(%arg0: i32, %arg1: i32, %arg2: memref<2x128x32xf32, #tpu.memory_space<vmem>>, %arg3: memref<1x128x32xf32, #tpu.memory_space<vmem>>, %arg4: memref<1x1x32xf32, #tpu.memory_space<vmem>>, %arg5: memref<1x32x512xf32, #tpu.memory_space<vmem>>, %arg6: memref<1x1x512xf32, #tpu.memory_space<vmem>>, %arg7: memref<1x512x16xf32, #tpu.memory_space<vmem>>, %arg8: memref<1x1x16xf32, #tpu.memory_space<vmem>>, %arg9: memref<1x4x128xf32, #tpu.memory_space<vmem>>, %arg10: memref<1x1x4xf32, #tpu.memory_space<vmem>>, %arg11: memref<1x2x4xf32, #tpu.memory_space<vmem>>) attributes {dimension_semantics = [#tpu.dimension_semantics<parallel>, #tpu.dimension_semantics<parallel>], iteration_bounds = array<i64: 1, 1>, scalar_prefetch = 0 : i64, scratch_operands = 0 : i64, tpu.core_type = #tpu.core_type<tc>, window_params = [{transform_indices = @transform_0, window_bounds = array<i64: 2, 128, 32>}, {transform_indices = @transform_1, window_bounds = array<i64: 1, 128, 32>}, {transform_indices = @transform_2, window_bounds = array<i64: 1, 1, 32>}, {transform_indices = @transform_3, window_bounds = array<i64: 1, 32, 512>}, {transform_indices = @transform_4, window_bounds = array<i64: 1, 1, 512>}, {transform_indices = @transform_5, window_bounds = array<i64: 1, 512, 16>}, {transform_indices = @transform_6, window_bounds = array<i64: 1, 1, 16>}, {transform_indices = @transform_7, window_bounds = array<i64: 1, 4, 128>}, {transform_indices = @transform_8, window_bounds = array<i64: 1, 1, 4>}, {transform_indices = @transform_9, window_bounds = array<i64: 1, 2, 4>}]} {
    %c0 = arith.constant 0 : index
    %c0_0 = arith.constant 0 : index
    %c0_1 = arith.constant 0 : index
    %0 = vector.load %arg2[%c0, %c0_0, %c0_1] : memref<2x128x32xf32, #tpu.memory_space<vmem>>, vector<2x128x32xf32>
    %cst = arith.constant dense<0.000000e+00> : vector<2x128xf32>
    %1 = vector.multi_reduction <add>, %0, %cst [2] : vector<2x128x32xf32> to vector<2x128xf32>
    %cst_2 = arith.constant 3.200000e+01 : f32
    %2 = vector.broadcast %cst_2 : f32 to vector<2x128xf32>
    %3 = arith.divf %1, %2 : vector<2x128xf32>
    %c0_3 = arith.constant 0 : index
    %c0_4 = arith.constant 0 : index
    %c0_5 = arith.constant 0 : index
    %4 = vector.load %arg3[%c0_3, %c0_4, %c0_5] : memref<1x128x32xf32, #tpu.memory_space<vmem>>, vector<1x128x32xf32>
    %5 = vector.shape_cast %4 : vector<1x128x32xf32> to vector<128x32xf32>
    %cst_6 = arith.constant dense<0.000000e+00> : vector<2x32xf32>
    %6 = tpu.matmul %3, %5, %cst_6 {dimension_numbers = #tpu.dot_dimension_numbers<[1], [0], [0], [1], [0, 0, 1, 1], [], []>} : vector<2x128xf32>, vector<128x32xf32>, vector<2x32xf32> -> vector<2x32xf32>
    %c0_7 = arith.constant 0 : index
    %c0_8 = arith.constant 0 : index
    %c0_9 = arith.constant 0 : index
    %7 = vector.load %arg4[%c0_7, %c0_8, %c0_9] : memref<1x1x32xf32, #tpu.memory_space<vmem>>, vector<1x1x32xf32>
    %8 = vector.shape_cast %7 : vector<1x1x32xf32> to vector<1x32xf32>
    %9 = vector.broadcast %8 : vector<1x32xf32> to vector<2x32xf32>
    %10 = arith.addf %6, %9 : vector<2x32xf32>
    %cst_10 = arith.constant 0.000000e+00 : f32
    %11 = vector.broadcast %cst_10 : f32 to vector<2x32xf32>
    %12 = arith.maximumf %10, %11 : vector<2x32xf32>
    %c0_11 = arith.constant 0 : index
    %c0_12 = arith.constant 0 : index
    %c0_13 = arith.constant 0 : index
    %13 = vector.load %arg5[%c0_11, %c0_12, %c0_13] : memref<1x32x512xf32, #tpu.memory_space<vmem>>, vector<1x32x512xf32>
    %14 = vector.shape_cast %13 : vector<1x32x512xf32> to vector<32x512xf32>
    %cst_14 = arith.constant dense<0.000000e+00> : vector<2x512xf32>
    %15 = tpu.matmul %12, %14, %cst_14 {dimension_numbers = #tpu.dot_dimension_numbers<[1], [0], [0], [1], [0, 0, 1, 1], [], []>} : vector<2x32xf32>, vector<32x512xf32>, vector<2x512xf32> -> vector<2x512xf32>
    %c0_15 = arith.constant 0 : index
    %c0_16 = arith.constant 0 : index
    %c0_17 = arith.constant 0 : index
    %16 = vector.load %arg6[%c0_15, %c0_16, %c0_17] : memref<1x1x512xf32, #tpu.memory_space<vmem>>, vector<1x1x512xf32>
    %17 = vector.shape_cast %16 : vector<1x1x512xf32> to vector<1x512xf32>
    %18 = vector.broadcast %17 : vector<1x512xf32> to vector<2x512xf32>
    %19 = arith.addf %15, %18 : vector<2x512xf32>
    %20 = arith.negf %19 : vector<2x512xf32>
    %21 = math.exp %20 : vector<2x512xf32>
    %cst_18 = arith.constant 1.000000e+00 : f32
    %22 = vector.broadcast %cst_18 : f32 to vector<2x512xf32>
    %23 = arith.addf %22, %21 : vector<2x512xf32>
    %24 = arith.divf %22, %23 : vector<2x512xf32>
    %25 = tpu.concatenate %3, %3, %3, %3 in 1 : vector<2x128xf32>, vector<2x128xf32>, vector<2x128xf32>, vector<2x128xf32> -> vector<2x512xf32>
    %cst_19 = arith.constant 1.000000e+00 : f32
    %26 = vector.broadcast %cst_19 : f32 to vector<2x512xf32>
    %27 = arith.addf %24, %26 : vector<2x512xf32>
    %28 = arith.mulf %25, %27 : vector<2x512xf32>
    %c0_20 = arith.constant 0 : index
    %c0_21 = arith.constant 0 : index
    %c0_22 = arith.constant 0 : index
    %29 = vector.load %arg7[%c0_20, %c0_21, %c0_22] : memref<1x512x16xf32, #tpu.memory_space<vmem>>, vector<1x512x16xf32>
    %30 = vector.shape_cast %29 : vector<1x512x16xf32> to vector<512x16xf32>
    %cst_23 = arith.constant dense<0.000000e+00> : vector<2x16xf32>
    %31 = tpu.matmul %28, %30, %cst_23 {dimension_numbers = #tpu.dot_dimension_numbers<[1], [0], [0], [1], [0, 0, 1, 1], [], []>} : vector<2x512xf32>, vector<512x16xf32>, vector<2x16xf32> -> vector<2x16xf32>
    %c0_24 = arith.constant 0 : index
    %c0_25 = arith.constant 0 : index
    %c0_26 = arith.constant 0 : index
    %32 = vector.load %arg8[%c0_24, %c0_25, %c0_26] : memref<1x1x16xf32, #tpu.memory_space<vmem>>, vector<1x1x16xf32>
    %33 = vector.shape_cast %32 : vector<1x1x16xf32> to vector<1x16xf32>
    %34 = vector.broadcast %33 : vector<1x16xf32> to vector<2x16xf32>
    %35 = arith.addf %31, %34 : vector<2x16xf32>
    %36 = vector.extract_strided_slice %24 {offsets = [0, 0], sizes = [2, 128], strides = [1, 1]} : vector<2x512xf32> to vector<2x128xf32>
    %37 = vector.shape_cast %36 : vector<2x128xf32> to vector<2x1x128xf32>
    %38 = vector.extract_strided_slice %24 {offsets = [0, 128], sizes = [2, 128], strides = [1, 1]} : vector<2x512xf32> to vector<2x128xf32>
    %39 = vector.shape_cast %38 : vector<2x128xf32> to vector<2x1x128xf32>
    %40 = vector.extract_strided_slice %24 {offsets = [0, 256], sizes = [2, 128], strides = [1, 1]} : vector<2x512xf32> to vector<2x128xf32>
    %41 = vector.shape_cast %40 : vector<2x128xf32> to vector<2x1x128xf32>
    %42 = vector.extract_strided_slice %24 {offsets = [0, 384], sizes = [2, 128], strides = [1, 1]} : vector<2x512xf32> to vector<2x128xf32>
    %43 = vector.shape_cast %42 : vector<2x128xf32> to vector<2x1x128xf32>
    %44 = tpu.concatenate %37, %39, %41, %43 in 1 : vector<2x1x128xf32>, vector<2x1x128xf32>, vector<2x1x128xf32>, vector<2x1x128xf32> -> vector<2x4x128xf32>
    %45 = vector.extract_strided_slice %35 {offsets = [0, 0], sizes = [2, 4], strides = [1, 1]} : vector<2x16xf32> to vector<2x4xf32>
    %46 = vector.shape_cast %45 : vector<2x4xf32> to vector<2x1x4xf32>
    %47 = vector.extract_strided_slice %35 {offsets = [0, 4], sizes = [2, 4], strides = [1, 1]} : vector<2x16xf32> to vector<2x4xf32>
    %48 = vector.shape_cast %47 : vector<2x4xf32> to vector<2x1x4xf32>
    %49 = vector.extract_strided_slice %35 {offsets = [0, 8], sizes = [2, 4], strides = [1, 1]} : vector<2x16xf32> to vector<2x4xf32>
    %50 = vector.shape_cast %49 : vector<2x4xf32> to vector<2x1x4xf32>
    %51 = vector.extract_strided_slice %35 {offsets = [0, 12], sizes = [2, 4], strides = [1, 1]} : vector<2x16xf32> to vector<2x4xf32>
    %52 = vector.shape_cast %51 : vector<2x4xf32> to vector<2x1x4xf32>
    %53 = tpu.concatenate %46, %48, %50, %52 in 1 : vector<2x1x4xf32>, vector<2x1x4xf32>, vector<2x1x4xf32>, vector<2x1x4xf32> -> vector<2x4x4xf32>
    %54 = tpu.iota {dimensions = array<i32: 2>} : vector<2x4x4xi32>
    %c2_i32 = arith.constant 2 : i32
    %55 = vector.broadcast %c2_i32 : i32 to vector<2x4x4xi32>
    %56 = arith.cmpi slt, %54, %55 : vector<2x4x4xi32>
    %57 = arith.negf %53 : vector<2x4x4xf32>
    %58 = math.exp %57 : vector<2x4x4xf32>
    %cst_27 = arith.constant 1.000000e+00 : f32
    %59 = vector.broadcast %cst_27 : f32 to vector<2x4x4xf32>
    %60 = arith.addf %59, %58 : vector<2x4x4xf32>
    %61 = arith.divf %59, %60 : vector<2x4x4xf32>
    %62 = math.tanh %53 : vector<2x4x4xf32>
    %63 = arith.select %56, %61, %62 : vector<2x4x4xi1>, vector<2x4x4xf32>
    %64 = vector.extract_strided_slice %63 {offsets = [0, 0, 0], sizes = [2, 4, 1], strides = [1, 1, 1]} : vector<2x4x4xf32> to vector<2x4x1xf32>
    %65 = vector.extract_strided_slice %63 {offsets = [0, 0, 1], sizes = [2, 4, 1], strides = [1, 1, 1]} : vector<2x4x4xf32> to vector<2x4x1xf32>
    %66 = vector.extract_strided_slice %63 {offsets = [0, 0, 2], sizes = [2, 4, 1], strides = [1, 1, 1]} : vector<2x4x4xf32> to vector<2x4x1xf32>
    %67 = vector.extract_strided_slice %63 {offsets = [0, 0, 3], sizes = [2, 4, 1], strides = [1, 1, 1]} : vector<2x4x4xf32> to vector<2x4x1xf32>
    %68 = tpu.iota {dimensions = array<i32: 2>} : vector<1x1x8x1xi32>
    %69 = arith.sitofp %68 : vector<1x1x8x1xi32> to vector<1x1x8x1xf32>
    %cst_28 = arith.constant 2.000000e+00 : f32
    %70 = vector.broadcast %cst_28 : f32 to vector<1x1x8x1xf32>
    %71 = arith.mulf %70, %69 : vector<1x1x8x1xf32>
    %cst_29 = arith.constant 1.000000e+00 : f32
    %72 = vector.broadcast %cst_29 : f32 to vector<1x1x8x1xf32>
    %73 = arith.addf %71, %72 : vector<1x1x8x1xf32>
    %cst_30 = arith.constant 8.000000e+00 : f32
    %74 = vector.broadcast %cst_30 : f32 to vector<1x1x8x1xf32>
    %75 = arith.divf %73, %74 : vector<1x1x8x1xf32>
    %cst_31 = arith.constant 1.000000e+00 : f32
    %76 = vector.broadcast %cst_31 : f32 to vector<1x1x8x1xf32>
    %77 = arith.subf %75, %76 : vector<1x1x8x1xf32>
    %78 = vector.shape_cast %65 : vector<2x4x1xf32> to vector<2x4x1x1xf32>
    %79 = vector.broadcast %78 : vector<2x4x1x1xf32> to vector<2x4x8x1xf32>
    %80 = vector.broadcast %77 : vector<1x1x8x1xf32> to vector<2x4x8x1xf32>
    %81 = arith.mulf %79, %80 : vector<2x4x8x1xf32>
    %82 = vector.shape_cast %67 : vector<2x4x1xf32> to vector<2x4x1x1xf32>
    %83 = vector.broadcast %82 : vector<2x4x1x1xf32> to vector<2x4x8x1xf32>
    %84 = arith.addf %81, %83 : vector<2x4x8x1xf32>
    %cst_32 = arith.constant 1.000000e+00 : f32
    %85 = vector.broadcast %cst_32 : f32 to vector<2x4x8x1xf32>
    %86 = arith.addf %84, %85 : vector<2x4x8x1xf32>
    %cst_33 = arith.constant 8.000000e+00 : f32
    %87 = vector.broadcast %cst_33 : f32 to vector<2x4x8x1xf32>
    %88 = arith.mulf %86, %87 : vector<2x4x8x1xf32>
    %cst_34 = arith.constant 1.000000e+00 : f32
    %89 = vector.broadcast %cst_34 : f32 to vector<2x4x8x1xf32>
    %90 = arith.subf %88, %89 : vector<2x4x8x1xf32>
    %cst_35 = arith.constant 5.000000e-01 : f32
    %91 = vector.broadcast %cst_35 : f32 to vector<2x4x8x1xf32>
    %92 = arith.mulf %90, %91 : vector<2x4x8x1xf32>
    %cst_36 = arith.constant 0.000000e+00 : f32
    %cst_37 = arith.constant 7.000000e+00 : f32
    %93 = vector.broadcast %cst_36 : f32 to vector<2x4x8x1xf32>
    %94 = arith.maximumf %93, %92 : vector<2x4x8x1xf32>
    %95 = vector.broadcast %cst_37 : f32 to vector<2x4x8x1xf32>
    %96 = arith.minimumf %95, %94 : vector<2x4x8x1xf32>
    %97 = math.floor %96 : vector<2x4x8x1xf32>
    %98 = arith.subf %96, %97 : vector<2x4x8x1xf32>
    %cst_38 = arith.constant 1.000000e+00 : f32
    %99 = vector.broadcast %cst_38 : f32 to vector<2x4x8x1xf32>
    %100 = arith.addf %97, %99 : vector<2x4x8x1xf32>
    %cst_39 = arith.constant 7.000000e+00 : f32
    %101 = vector.broadcast %cst_39 : f32 to vector<2x4x8x1xf32>
    %102 = arith.minimumf %100, %101 : vector<2x4x8x1xf32>
    %103 = tpu.iota {dimensions = array<i32: 3>} : vector<1x1x1x8xi32>
    %104 = arith.sitofp %103 : vector<1x1x1x8xi32> to vector<1x1x1x8xf32>
    %105 = vector.broadcast %104 : vector<1x1x1x8xf32> to vector<2x4x8x8xf32>
    %106 = vector.broadcast %97 : vector<2x4x8x1xf32> to vector<2x4x8x8xf32>
    %107 = arith.cmpf oeq, %105, %106 : vector<2x4x8x8xf32>
    %cst_40 = arith.constant 1.000000e+00 : f32
    %108 = vector.broadcast %cst_40 : f32 to vector<2x4x8x1xf32>
    %109 = arith.subf %108, %98 : vector<2x4x8x1xf32>
    %cst_41 = arith.constant 0.000000e+00 : f32
    %110 = vector.shape_cast %109 : vector<2x4x8x1xf32> to vector<2x4x8x1xf32>
    %111 = vector.broadcast %110 : vector<2x4x8x1xf32> to vector<2x4x8x8xf32>
    %112 = vector.broadcast %cst_41 : f32 to vector<2x4x8x8xf32>
    %113 = arith.select %107, %111, %112 : vector<2x4x8x8xi1>, vector<2x4x8x8xf32>
    %114 = vector.broadcast %104 : vector<1x1x1x8xf32> to vector<2x4x8x8xf32>
    %115 = vector.broadcast %102 : vector<2x4x8x1xf32> to vector<2x4x8x8xf32>
    %116 = arith.cmpf oeq, %114, %115 : vector<2x4x8x8xf32>
    %cst_42 = arith.constant 0.000000e+00 : f32
    %117 = vector.shape_cast %98 : vector<2x4x8x1xf32> to vector<2x4x8x1xf32>
    %118 = vector.broadcast %117 : vector<2x4x8x1xf32> to vector<2x4x8x8xf32>
    %119 = vector.broadcast %cst_42 : f32 to vector<2x4x8x8xf32>
    %120 = arith.select %116, %118, %119 : vector<2x4x8x8xi1>, vector<2x4x8x8xf32>
    %121 = arith.addf %113, %120 : vector<2x4x8x8xf32>
    %cst_43 = arith.constant dense<0.000000e+00> : vector<2x4x8xf32>
    %122 = vector.multi_reduction <add>, %121, %cst_43 [2] : vector<2x4x8x8xf32> to vector<2x4x8xf32>
    %cst_44 = arith.constant 8.000000e+00 : f32
    %123 = vector.broadcast %cst_44 : f32 to vector<2x4x8xf32>
    %124 = arith.divf %122, %123 : vector<2x4x8xf32>
    %125 = tpu.iota {dimensions = array<i32: 2>} : vector<1x1x4x1xi32>
    %126 = arith.sitofp %125 : vector<1x1x4x1xi32> to vector<1x1x4x1xf32>
    %cst_45 = arith.constant 2.000000e+00 : f32
    %127 = vector.broadcast %cst_45 : f32 to vector<1x1x4x1xf32>
    %128 = arith.mulf %127, %126 : vector<1x1x4x1xf32>
    %cst_46 = arith.constant 1.000000e+00 : f32
    %129 = vector.broadcast %cst_46 : f32 to vector<1x1x4x1xf32>
    %130 = arith.addf %128, %129 : vector<1x1x4x1xf32>
    %cst_47 = arith.constant 4.000000e+00 : f32
    %131 = vector.broadcast %cst_47 : f32 to vector<1x1x4x1xf32>
    %132 = arith.divf %130, %131 : vector<1x1x4x1xf32>
    %cst_48 = arith.constant 1.000000e+00 : f32
    %133 = vector.broadcast %cst_48 : f32 to vector<1x1x4x1xf32>
    %134 = arith.subf %132, %133 : vector<1x1x4x1xf32>
    %135 = vector.shape_cast %64 : vector<2x4x1xf32> to vector<2x4x1x1xf32>
    %136 = vector.broadcast %135 : vector<2x4x1x1xf32> to vector<2x4x4x1xf32>
    %137 = vector.broadcast %134 : vector<1x1x4x1xf32> to vector<2x4x4x1xf32>
    %138 = arith.mulf %136, %137 : vector<2x4x4x1xf32>
    %139 = vector.shape_cast %66 : vector<2x4x1xf32> to vector<2x4x1x1xf32>
    %140 = vector.broadcast %139 : vector<2x4x1x1xf32> to vector<2x4x4x1xf32>
    %141 = arith.addf %138, %140 : vector<2x4x4x1xf32>
    %cst_49 = arith.constant 1.000000e+00 : f32
    %142 = vector.broadcast %cst_49 : f32 to vector<2x4x4x1xf32>
    %143 = arith.addf %141, %142 : vector<2x4x4x1xf32>
    %cst_50 = arith.constant 4.000000e+00 : f32
    %144 = vector.broadcast %cst_50 : f32 to vector<2x4x4x1xf32>
    %145 = arith.mulf %143, %144 : vector<2x4x4x1xf32>
    %cst_51 = arith.constant 1.000000e+00 : f32
    %146 = vector.broadcast %cst_51 : f32 to vector<2x4x4x1xf32>
    %147 = arith.subf %145, %146 : vector<2x4x4x1xf32>
    %cst_52 = arith.constant 5.000000e-01 : f32
    %148 = vector.broadcast %cst_52 : f32 to vector<2x4x4x1xf32>
    %149 = arith.mulf %147, %148 : vector<2x4x4x1xf32>
    %cst_53 = arith.constant 0.000000e+00 : f32
    %cst_54 = arith.constant 3.000000e+00 : f32
    %150 = vector.broadcast %cst_53 : f32 to vector<2x4x4x1xf32>
    %151 = arith.maximumf %150, %149 : vector<2x4x4x1xf32>
    %152 = vector.broadcast %cst_54 : f32 to vector<2x4x4x1xf32>
    %153 = arith.minimumf %152, %151 : vector<2x4x4x1xf32>
    %154 = math.floor %153 : vector<2x4x4x1xf32>
    %155 = arith.subf %153, %154 : vector<2x4x4x1xf32>
    %cst_55 = arith.constant 1.000000e+00 : f32
    %156 = vector.broadcast %cst_55 : f32 to vector<2x4x4x1xf32>
    %157 = arith.addf %154, %156 : vector<2x4x4x1xf32>
    %cst_56 = arith.constant 3.000000e+00 : f32
    %158 = vector.broadcast %cst_56 : f32 to vector<2x4x4x1xf32>
    %159 = arith.minimumf %157, %158 : vector<2x4x4x1xf32>
    %160 = tpu.iota {dimensions = array<i32: 3>} : vector<1x1x1x4xi32>
    %161 = arith.sitofp %160 : vector<1x1x1x4xi32> to vector<1x1x1x4xf32>
    %162 = vector.broadcast %161 : vector<1x1x1x4xf32> to vector<2x4x4x4xf32>
    %163 = vector.broadcast %154 : vector<2x4x4x1xf32> to vector<2x4x4x4xf32>
    %164 = arith.cmpf oeq, %162, %163 : vector<2x4x4x4xf32>
    %cst_57 = arith.constant 1.000000e+00 : f32
    %165 = vector.broadcast %cst_57 : f32 to vector<2x4x4x1xf32>
    %166 = arith.subf %165, %155 : vector<2x4x4x1xf32>
    %cst_58 = arith.constant 0.000000e+00 : f32
    %167 = vector.shape_cast %166 : vector<2x4x4x1xf32> to vector<2x4x4x1xf32>
    %168 = vector.broadcast %167 : vector<2x4x4x1xf32> to vector<2x4x4x4xf32>
    %169 = vector.broadcast %cst_58 : f32 to vector<2x4x4x4xf32>
    %170 = arith.select %164, %168, %169 : vector<2x4x4x4xi1>, vector<2x4x4x4xf32>
    %171 = vector.broadcast %161 : vector<1x1x1x4xf32> to vector<2x4x4x4xf32>
    %172 = vector.broadcast %159 : vector<2x4x4x1xf32> to vector<2x4x4x4xf32>
    %173 = arith.cmpf oeq, %171, %172 : vector<2x4x4x4xf32>
    %cst_59 = arith.constant 0.000000e+00 : f32
    %174 = vector.shape_cast %155 : vector<2x4x4x1xf32> to vector<2x4x4x1xf32>
    %175 = vector.broadcast %174 : vector<2x4x4x1xf32> to vector<2x4x4x4xf32>
    %176 = vector.broadcast %cst_59 : f32 to vector<2x4x4x4xf32>
    %177 = arith.select %173, %175, %176 : vector<2x4x4x4xi1>, vector<2x4x4x4xf32>
    %178 = arith.addf %170, %177 : vector<2x4x4x4xf32>
    %cst_60 = arith.constant dense<0.000000e+00> : vector<2x4x4xf32>
    %179 = vector.multi_reduction <add>, %178, %cst_60 [2] : vector<2x4x4x4xf32> to vector<2x4x4xf32>
    %cst_61 = arith.constant 4.000000e+00 : f32
    %180 = vector.broadcast %cst_61 : f32 to vector<2x4x4xf32>
    %181 = arith.divf %179, %180 : vector<2x4x4xf32>
    %182 = tpu.iota {dimensions = array<i32: 2>} : vector<2x1x32xi32>
    %183 = arith.sitofp %182 : vector<2x1x32xi32> to vector<2x1x32xf32>
    %cst_62 = arith.constant 5.000000e-01 : f32
    %184 = vector.broadcast %cst_62 : f32 to vector<2x1x32xf32>
    %185 = arith.addf %183, %184 : vector<2x1x32xf32>
    %cst_63 = arith.constant 2.500000e-01 : f32
    %186 = vector.broadcast %cst_63 : f32 to vector<2x1x32xf32>
    %187 = arith.mulf %185, %186 : vector<2x1x32xf32>
    %188 = math.floor %187 : vector<2x1x32xf32>
    %cst_64 = arith.constant 4.000000e+00 : f32
    %189 = vector.broadcast %cst_64 : f32 to vector<2x1x32xf32>
    %190 = arith.mulf %188, %189 : vector<2x1x32xf32>
    %191 = arith.subf %183, %190 : vector<2x1x32xf32>
    %192 = tpu.iota {dimensions = array<i32: 1>} : vector<2x8x1xi32>
    %193 = arith.sitofp %192 : vector<2x8x1xi32> to vector<2x8x1xf32>
    %194 = tpu.iota {dimensions = array<i32: 1>} : vector<2x4x1xi32>
    %195 = arith.sitofp %194 : vector<2x4x1xi32> to vector<2x4x1xf32>
    %196 = vector.broadcast %193 : vector<2x8x1xf32> to vector<2x8x32xf32>
    %197 = vector.broadcast %188 : vector<2x1x32xf32> to vector<2x8x32xf32>
    %198 = arith.cmpf oeq, %196, %197 : vector<2x8x32xf32>
    %199 = arith.extui %198 : vector<2x8x32xi1> to vector<2x8x32xi32>
    %200 = arith.sitofp %199 : vector<2x8x32xi32> to vector<2x8x32xf32>
    %201 = vector.broadcast %195 : vector<2x4x1xf32> to vector<2x4x32xf32>
    %202 = vector.broadcast %191 : vector<2x1x32xf32> to vector<2x4x32xf32>
    %203 = arith.cmpf oeq, %201, %202 : vector<2x4x32xf32>
    %204 = arith.extui %203 : vector<2x4x32xi1> to vector<2x4x32xi32>
    %205 = arith.sitofp %204 : vector<2x4x32xi32> to vector<2x4x32xf32>
    "tpu.trace_start"() <{level = 10 : i32, message = "bkh,bhs->bks"}> : () -> ()
    %cst_65 = arith.constant dense<0.000000e+00> : vector<2x4x32xf32>
    %206 = tpu.matmul %124, %200, %cst_65 {dimension_numbers = #tpu.dot_dimension_numbers<[2], [1], [1], [2], [0, 0, 0, 1, 1, 2], [0], [0]>} : vector<2x4x8xf32>, vector<2x8x32xf32>, vector<2x4x32xf32> -> vector<2x4x32xf32>
    "tpu.trace_stop"() : () -> ()
    "tpu.trace_start"() <{level = 10 : i32, message = "bkw,bws->bks"}> : () -> ()
    %cst_66 = arith.constant dense<0.000000e+00> : vector<2x4x32xf32>
    %207 = tpu.matmul %181, %205, %cst_66 {dimension_numbers = #tpu.dot_dimension_numbers<[2], [1], [1], [2], [0, 0, 0, 1, 1, 2], [0], [0]>} : vector<2x4x4xf32>, vector<2x4x32xf32>, vector<2x4x32xf32> -> vector<2x4x32xf32>
    "tpu.trace_stop"() : () -> ()
    %208 = arith.mulf %206, %207 : vector<2x4x32xf32>
    "tpu.trace_start"() <{level = 10 : i32, message = "bks,bcs->bkc"}> : () -> ()
    %cst_67 = arith.constant dense<0.000000e+00> : vector<2x4x128xf32>
    %209 = tpu.matmul %208, %0, %cst_67 {dimension_numbers = #tpu.dot_dimension_numbers<[2], [2], [1], [1], [0, 0, 0, 1, 1, 1], [0], [0]>} : vector<2x4x32xf32>, vector<2x128x32xf32>, vector<2x4x128xf32> -> vector<2x4x128xf32>
    "tpu.trace_stop"() : () -> ()
    %cst_68 = arith.constant 1.000000e+00 : f32
    %210 = vector.broadcast %cst_68 : f32 to vector<2x4x128xf32>
    %211 = arith.addf %44, %210 : vector<2x4x128xf32>
    %c0_69 = arith.constant 0 : index
    %c0_70 = arith.constant 0 : index
    %c0_71 = arith.constant 0 : index
    %212 = vector.load %arg9[%c0_69, %c0_70, %c0_71] : memref<1x4x128xf32, #tpu.memory_space<vmem>>, vector<1x4x128xf32>
    %213 = vector.broadcast %212 : vector<1x4x128xf32> to vector<2x4x128xf32>
    %214 = arith.mulf %211, %213 : vector<2x4x128xf32>
    %215 = arith.mulf %209, %214 : vector<2x4x128xf32>
    %cst_72 = arith.constant dense<0.000000e+00> : vector<2x4xf32>
    %216 = vector.multi_reduction <add>, %215, %cst_72 [2] : vector<2x4x128xf32> to vector<2x4xf32>
    %c0_73 = arith.constant 0 : index
    %c0_74 = arith.constant 0 : index
    %c0_75 = arith.constant 0 : index
    %217 = vector.load %arg10[%c0_73, %c0_74, %c0_75] : memref<1x1x4xf32, #tpu.memory_space<vmem>>, vector<1x1x4xf32>
    %218 = vector.shape_cast %217 : vector<1x1x4xf32> to vector<1x4xf32>
    %219 = vector.broadcast %218 : vector<1x4xf32> to vector<2x4xf32>
    %220 = arith.addf %216, %219 : vector<2x4xf32>
    %221 = vector.shape_cast %220 : vector<2x4xf32> to vector<1x2x4xf32>
    %c0_76 = arith.constant 0 : index
    %c0_77 = arith.constant 0 : index
    %c0_78 = arith.constant 0 : index
    %222 = vector.load %arg11[%c0_76, %c0_77, %c0_78] : memref<1x2x4xf32, #tpu.memory_space<vmem>>, vector<1x2x4xf32>
    tpu.vector_store %arg11[%c0_76, %c0_77, %c0_78], %221 {strides = array<i32>} : memref<1x2x4xf32, #tpu.memory_space<vmem>>, vector<1x2x4xf32>,
    return
  }
  func.func @transform_0(%arg0: i32, %arg1: i32) -> (i32, i32, i32) {
    %c0_i32 = arith.constant 0 : i32
    %c0_i32_0 = arith.constant 0 : i32
    %c0_i32_1 = arith.constant 0 : i32
    return %arg0, %c0_i32, %c0_i32_0 : i32, i32, i32
  }
  func.func @transform_1(%arg0: i32, %arg1: i32) -> (i32, i32, i32) {
    %c0_i32 = arith.constant 0 : i32
    %c0_i32_0 = arith.constant 0 : i32
    %c0_i32_1 = arith.constant 0 : i32
    return %arg1, %c0_i32, %c0_i32_0 : i32, i32, i32
  }
  func.func @transform_2(%arg0: i32, %arg1: i32) -> (i32, i32, i32) {
    %c0_i32 = arith.constant 0 : i32
    %c0_i32_0 = arith.constant 0 : i32
    %c0_i32_1 = arith.constant 0 : i32
    return %arg1, %c0_i32, %c0_i32_0 : i32, i32, i32
  }
  func.func @transform_3(%arg0: i32, %arg1: i32) -> (i32, i32, i32) {
    %c0_i32 = arith.constant 0 : i32
    %c0_i32_0 = arith.constant 0 : i32
    %c0_i32_1 = arith.constant 0 : i32
    return %arg1, %c0_i32, %c0_i32_0 : i32, i32, i32
  }
  func.func @transform_4(%arg0: i32, %arg1: i32) -> (i32, i32, i32) {
    %c0_i32 = arith.constant 0 : i32
    %c0_i32_0 = arith.constant 0 : i32
    %c0_i32_1 = arith.constant 0 : i32
    return %arg1, %c0_i32, %c0_i32_0 : i32, i32, i32
  }
  func.func @transform_5(%arg0: i32, %arg1: i32) -> (i32, i32, i32) {
    %c0_i32 = arith.constant 0 : i32
    %c0_i32_0 = arith.constant 0 : i32
    %c0_i32_1 = arith.constant 0 : i32
    return %arg1, %c0_i32, %c0_i32_0 : i32, i32, i32
  }
  func.func @transform_6(%arg0: i32, %arg1: i32) -> (i32, i32, i32) {
    %c0_i32 = arith.constant 0 : i32
    %c0_i32_0 = arith.constant 0 : i32
    %c0_i32_1 = arith.constant 0 : i32
    return %arg1, %c0_i32, %c0_i32_0 : i32, i32, i32
  }
  func.func @transform_7(%arg0: i32, %arg1: i32) -> (i32, i32, i32) {
    %c0_i32 = arith.constant 0 : i32
    %c0_i32_0 = arith.constant 0 : i32
    %c0_i32_1 = arith.constant 0 : i32
    return %arg1, %c0_i32, %c0_i32_0 : i32, i32, i32
  }
  func.func @transform_8(%arg0: i32, %arg1: i32) -> (i32, i32, i32) {
    %c0_i32 = arith.constant 0 : i32
    %c0_i32_0 = arith.constant 0 : i32
    %c0_i32_1 = arith.constant 0 : i32
    return %arg1, %c0_i32, %c0_i32_0 : i32, i32, i32
  }
  func.func @transform_9(%arg0: i32, %arg1: i32) -> (i32, i32, i32) {
    %c0_i32 = arith.constant 0 : i32
    %c0_i32_0 = arith.constant 0 : i32
    return %arg1, %arg0, %c0_i32 : i32, i32, i32
  }
}

</mosaic_0001>

<llo_original>
// kernel: tpu_custom_call.1
$region0: #{tpu_custom_call.1}
  #allocation0 [shape = 'u32[]', space=smem, size = 0x4, offset = 0x4, fixed_abs, tag = 'smem constant byte address 0x4 - core index']
  #allocation1 [shape = 'u32[72,128]{1,0:T(1,128)}', space=vmem, size = 0x9000, scoped, tag = 'internal scratch']
  %s0 = inlined_call_operand.vmem [shape: f32[2,128,32], index: 0, kind: input, shape index: {}]
  %s1 = inlined_call_operand.vmem [shape: f32[1,128,32], index: 1, kind: input, shape index: {}]
  %s2 = inlined_call_operand.vmem [shape: f32[1,1,32], index: 2, kind: input, shape index: {}]
  %s3 = inlined_call_operand.vmem [shape: f32[1,32,512], index: 3, kind: input, shape index: {}]
  %s4 = inlined_call_operand.vmem [shape: f32[1,1,512], index: 4, kind: input, shape index: {}]
  %s5 = inlined_call_operand.vmem [shape: f32[1,512,16], index: 5, kind: input, shape index: {}]
  %s6 = inlined_call_operand.vmem [shape: f32[1,1,16], index: 6, kind: input, shape index: {}]
  %s7 = inlined_call_operand.vmem [shape: f32[1,4,128], index: 7, kind: input, shape index: {}]
  %s8 = inlined_call_operand.vmem [shape: f32[1,1,4], index: 8, kind: input, shape index: {}]
  %s9 = inlined_call_operand.hbm [shape: f32[1,2,4], index: 9, kind: output, shape index: {}]
  %s10 = sld [smem:[#allocation0]]
  $region46: #{tpu_custom_call.1} parent=0
    _
  %s12 = ssub.s32 1, %s10
  %s13 = scalar_select 0, %s12, %s10
  $region1: #{tpu_custom_call.1} parent=0
    #allocation2 [shape = 'u8[1024]{0}', space=vmem, size = 0x400, scoped, tag = 'output window, operand 0, single buffered']
    #allocation3 [shape = 's32[1]{0}', space=sflag, size = 0x4, scoped, tag = 'scoped memory for tpu_custom_call.1']
    %14 = vsyncpa [#allocation3], 0
    // Predicated region
    $region2: #{tpu_custom_call.1} parent=1 // pred_check
      _
    $region3: #{tpu_custom_call.1} parent=1 // pred_check_branch
      %16 = sbr.rel (0) target = $region5
    $region4: #{tpu_custom_call.1} parent=1 // pred_region
      _
    $region5: #{tpu_custom_call.1} parent=1 // pred_fallthru
      _
    // Predicated region
    $region6: #{tpu_custom_call.1} parent=1 // pred_check
      _
    $region7: #{tpu_custom_call.1} parent=1 // pred_check_branch
      %18 = sbr.rel (0) target = $region9
    $region8: #{tpu_custom_call.1} parent=1 // pred_region
      _
    $region9: #{tpu_custom_call.1} parent=1 // pred_fallthru
      _
    // Predicated region
    $region10: #{tpu_custom_call.1} parent=1 // pred_check
      _
    $region11: #{tpu_custom_call.1} parent=1 // pred_check_branch
      %20 = sbr.rel (0) target = $region13
    $region12: #{tpu_custom_call.1} parent=1 // pred_region
      _
    $region13: #{tpu_custom_call.1} parent=1 // pred_fallthru
      _
    // Predicated region
    $region14: #{tpu_custom_call.1} parent=1 // pred_check
      _
    $region15: #{tpu_custom_call.1} parent=1 // pred_check_branch
      %22 = sbr.rel (0) target = $region17
    $region16: #{tpu_custom_call.1} parent=1 // pred_region
      _
    $region17: #{tpu_custom_call.1} parent=1 // pred_fallthru
      _
    // Predicated region
    $region18: #{tpu_custom_call.1} parent=1 // pred_check
      _
    $region19: #{tpu_custom_call.1} parent=1 // pred_check_branch
      %24 = sbr.rel (0) target = $region21
    $region20: #{tpu_custom_call.1} parent=1 // pred_region
      _
    $region21: #{tpu_custom_call.1} parent=1 // pred_fallthru
      _
    // Predicated region
    $region22: #{tpu_custom_call.1} parent=1 // pred_check
      _
    $region23: #{tpu_custom_call.1} parent=1 // pred_check_branch
      %26 = sbr.rel (0) target = $region25
    $region24: #{tpu_custom_call.1} parent=1 // pred_region
      _
    $region25: #{tpu_custom_call.1} parent=1 // pred_fallthru
      _
    // Predicated region
    $region26: #{tpu_custom_call.1} parent=1 // pred_check
      _
    $region27: #{tpu_custom_call.1} parent=1 // pred_check_branch
      %28 = sbr.rel (0) target = $region29
    $region28: #{tpu_custom_call.1} parent=1 // pred_region
      _
    $region29: #{tpu_custom_call.1} parent=1 // pred_fallthru
      _
    // Predicated region
    $region30: #{tpu_custom_call.1} parent=1 // pred_check
      _
    $region31: #{tpu_custom_call.1} parent=1 // pred_check_branch
      %30 = sbr.rel (0) target = $region33
    $region32: #{tpu_custom_call.1} parent=1 // pred_region
      _
    $region33: #{tpu_custom_call.1} parent=1 // pred_fallthru
      _
    // Predicated region
    $region34: #{tpu_custom_call.1} parent=1 // pred_check
      _
    $region35: #{tpu_custom_call.1} parent=1 // pred_check_branch
      %32 = sbr.rel (0) target = $region37
    $region36: #{tpu_custom_call.1} parent=1 // pred_region
      _
    $region37: #{tpu_custom_call.1} parent=1 // pred_fallthru
      _
    %v33 = vld [vmem:[%s0] sm:$0xff]
    %v34 = vld [vmem:[%s0 + $0x8] sm:$0xff]
    %v35 = vld [vmem:[%s0 + $0x10] sm:$0xff]
    %v36 = vld [vmem:[%s0 + $0x18] sm:$0xff]
    %v37 = vld [vmem:[%s0 + $0x20] sm:$0xff]
    %v38 = vld [vmem:[%s0 + $0x28] sm:$0xff]
    %v39 = vld [vmem:[%s0 + $0x30] sm:$0xff]
    %v40 = vld [vmem:[%s0 + $0x38] sm:$0xff]
    %v41 = vld [vmem:[%s0 + $0x40] sm:$0xff]
    %v42 = vld [vmem:[%s0 + $0x48] sm:$0xff]
    %v43 = vld [vmem:[%s0 + $0x50] sm:$0xff]
    %v44 = vld [vmem:[%s0 + $0x58] sm:$0xff]
    %v45 = vld [vmem:[%s0 + $0x60] sm:$0xff]
    %v46 = vld [vmem:[%s0 + $0x68] sm:$0xff]
    %v47 = vld [vmem:[%s0 + $0x70] sm:$0xff]
    %v48 = vld [vmem:[%s0 + $0x78] sm:$0xff]
    %v49 = vld [vmem:[%s0 + $0x80] sm:$0xff]
    %v50 = vld [vmem:[%s0 + $0x88] sm:$0xff]
    %v51 = vld [vmem:[%s0 + $0x90] sm:$0xff]
    %v52 = vld [vmem:[%s0 + $0x98] sm:$0xff]
    %v53 = vld [vmem:[%s0 + $0xa0] sm:$0xff]
    %v54 = vld [vmem:[%s0 + $0xa8] sm:$0xff]
    %v55 = vld [vmem:[%s0 + $0xb0] sm:$0xff]
    %v56 = vld [vmem:[%s0 + $0xb8] sm:$0xff]
    %v57 = vld [vmem:[%s0 + $0xc0] sm:$0xff]
    %v58 = vld [vmem:[%s0 + $0xc8] sm:$0xff]
    %v59 = vld [vmem:[%s0 + $0xd0] sm:$0xff]
    %v60 = vld [vmem:[%s0 + $0xd8] sm:$0xff]
    %v61 = vld [vmem:[%s0 + $0xe0] sm:$0xff]
    %v62 = vld [vmem:[%s0 + $0xe8] sm:$0xff]
    %v63 = vld [vmem:[%s0 + $0xf0] sm:$0xff]
    %v64 = vld [vmem:[%s0 + $0xf8] sm:$0xff]
    %vm65 = vcmask 261120
    %v66 = vsel %vm65, %v33, 0.0
    %67 = vadd.xlane.f32.xlu0 %v66
    %v68 = vpop.xlane.xlu0 %67
    %v69 = vsel %vm65, %v34, 0.0
    %70 = vadd.xlane.f32.xlu0 %v69
    %v71 = vpop.xlane.xlu0 %70
    %v72 = vsel %vm65, %v35, 0.0
    %73 = vadd.xlane.f32.xlu0 %v72
    %v74 = vpop.xlane.xlu0 %73
    %v75 = vsel %vm65, %v36, 0.0
    %76 = vadd.xlane.f32.xlu0 %v75
    %v77 = vpop.xlane.xlu0 %76
    %v78 = vsel %vm65, %v37, 0.0
    %79 = vadd.xlane.f32.xlu0 %v78
    %v80 = vpop.xlane.xlu0 %79
    %v81 = vsel %vm65, %v38, 0.0
    %82 = vadd.xlane.f32.xlu0 %v81
    %v83 = vpop.xlane.xlu0 %82
    %v84 = vsel %vm65, %v39, 0.0
    %85 = vadd.xlane.f32.xlu0 %v84
    %v86 = vpop.xlane.xlu0 %85
    %v87 = vsel %vm65, %v40, 0.0
    %88 = vadd.xlane.f32.xlu0 %v87
    %v89 = vpop.xlane.xlu0 %88
    %v90 = vsel %vm65, %v41, 0.0
    %91 = vadd.xlane.f32.xlu0 %v90
    %v92 = vpop.xlane.xlu0 %91
    %v93 = vsel %vm65, %v42, 0.0
    %94 = vadd.xlane.f32.xlu0 %v93
    %v95 = vpop.xlane.xlu0 %94
    %v96 = vsel %vm65, %v43, 0.0
    %97 = vadd.xlane.f32.xlu0 %v96
    %v98 = vpop.xlane.xlu0 %97
    %v99 = vsel %vm65, %v44, 0.0
    %100 = vadd.xlane.f32.xlu0 %v99
    %v101 = vpop.xlane.xlu0 %100
    %v102 = vsel %vm65, %v45, 0.0
    %103 = vadd.xlane.f32.xlu0 %v102
    %v104 = vpop.xlane.xlu0 %103
    %v105 = vsel %vm65, %v46, 0.0
    %106 = vadd.xlane.f32.xlu0 %v105
    %v107 = vpop.xlane.xlu0 %106
    %v108 = vsel %vm65, %v47, 0.0
    %109 = vadd.xlane.f32.xlu0 %v108
    %v110 = vpop.xlane.xlu0 %109
    %v111 = vsel %vm65, %v48, 0.0
    %112 = vadd.xlane.f32.xlu0 %v111
    %v113 = vpop.xlane.xlu0 %112
    %v114 = vsel %vm65, %v49, 0.0
    %115 = vadd.xlane.f32.xlu0 %v114
    %v116 = vpop.xlane.xlu0 %115
    %v117 = vsel %vm65, %v50, 0.0
    %118 = vadd.xlane.f32.xlu0 %v117
    %v119 = vpop.xlane.xlu0 %118
    %v120 = vsel %vm65, %v51, 0.0
    %121 = vadd.xlane.f32.xlu0 %v120
    %v122 = vpop.xlane.xlu0 %121
    %v123 = vsel %vm65, %v52, 0.0
    %124 = vadd.xlane.f32.xlu0 %v123
    %v125 = vpop.xlane.xlu0 %124
    %v126 = vsel %vm65, %v53, 0.0
    %127 = vadd.xlane.f32.xlu0 %v126
    %v128 = vpop.xlane.xlu0 %127
    %v129 = vsel %vm65, %v54, 0.0
    %130 = vadd.xlane.f32.xlu0 %v129
    %v131 = vpop.xlane.xlu0 %130
    %v132 = vsel %vm65, %v55, 0.0
    %133 = vadd.xlane.f32.xlu0 %v132
    %v134 = vpop.xlane.xlu0 %133
    %v135 = vsel %vm65, %v56, 0.0
    %136 = vadd.xlane.f32.xlu0 %v135
    %v137 = vpop.xlane.xlu0 %136
    %v138 = vsel %vm65, %v57, 0.0
    %139 = vadd.xlane.f32.xlu0 %v138
    %v140 = vpop.xlane.xlu0 %139
    %v141 = vsel %vm65, %v58, 0.0
    %142 = vadd.xlane.f32.xlu0 %v141
    %v143 = vpop.xlane.xlu0 %142
    %v144 = vsel %vm65, %v59, 0.0
    %145 = vadd.xlane.f32.xlu0 %v144
    %v146 = vpop.xlane.xlu0 %145
    %v147 = vsel %vm65, %v60, 0.0
    %148 = vadd.xlane.f32.xlu0 %v147
    %v149 = vpop.xlane.xlu0 %148
    %v150 = vsel %vm65, %v61, 0.0
    %151 = vadd.xlane.f32.xlu0 %v150
    %v152 = vpop.xlane.xlu0 %151
    %v153 = vsel %vm65, %v62, 0.0
    %154 = vadd.xlane.f32.xlu0 %v153
    %v155 = vpop.xlane.xlu0 %154
    %v156 = vsel %vm65, %v63, 0.0
    %157 = vadd.xlane.f32.xlu0 %v156
    %v158 = vpop.xlane.xlu0 %157
    %v159 = vsel %vm65, %v64, 0.0
    %160 = vadd.xlane.f32.xlu0 %v159
    %v161 = vpop.xlane.xlu0 %160
    %v162 = vrcp.pop 32.0
    %v163 = vmul.f32 32.0, %v162
    %v164 = vsub.f32 1.0, %v163
    %v165 = vmul.f32 %v162, %v164
    %v166 = vadd.f32 %v162, %v165
    %vm167 = vweird.f32 %v162
    %v168 = vsel %vm167, %v162, %v166
    %v169 = vmul.f32 %v68, %v168
    %v170 = vmul.f32 %v71, %v168
    %v171 = vmul.f32 %v74, %v168
    %v172 = vmul.f32 %v77, %v168
    %v173 = vmul.f32 %v80, %v168
    %v174 = vmul.f32 %v83, %v168
    %v175 = vmul.f32 %v86, %v168
    %v176 = vmul.f32 %v89, %v168
    %v177 = vmul.f32 %v92, %v168
    %v178 = vmul.f32 %v95, %v168
    %v179 = vmul.f32 %v98, %v168
    %v180 = vmul.f32 %v101, %v168
    %v181 = vmul.f32 %v104, %v168
    %v182 = vmul.f32 %v107, %v168
    %v183 = vmul.f32 %v110, %v168
    %v184 = vmul.f32 %v113, %v168
    %v185 = vmul.f32 %v116, %v168
    %v186 = vmul.f32 %v119, %v168
    %v187 = vmul.f32 %v122, %v168
    %v188 = vmul.f32 %v125, %v168
    %v189 = vmul.f32 %v128, %v168
    %v190 = vmul.f32 %v131, %v168
    %v191 = vmul.f32 %v134, %v168
    %v192 = vmul.f32 %v137, %v168
    %v193 = vmul.f32 %v140, %v168
    %v194 = vmul.f32 %v143, %v168
    %v195 = vmul.f32 %v146, %v168
    %v196 = vmul.f32 %v149, %v168
    %v197 = vmul.f32 %v152, %v168
    %v198 = vmul.f32 %v155, %v168
    %v199 = vmul.f32 %v158, %v168
    %v200 = vmul.f32 %v161, %v168
    %v201 = vld [vmem:[%s1] sm:$0xff]
    %v202 = vld [vmem:[%s1 + $0x8] sm:$0xff]
    %v203 = vld [vmem:[%s1 + $0x10] sm:$0xff]
    %v204 = vld [vmem:[%s1 + $0x18] sm:$0xff]
    %v205 = vld [vmem:[%s1 + $0x20] sm:$0xff]
    %v206 = vld [vmem:[%s1 + $0x28] sm:$0xff]
    %v207 = vld [vmem:[%s1 + $0x30] sm:$0xff]
    %v208 = vld [vmem:[%s1 + $0x38] sm:$0xff]
    %v209 = vld [vmem:[%s1 + $0x40] sm:$0xff]
    %v210 = vld [vmem:[%s1 + $0x48] sm:$0xff]
    %v211 = vld [vmem:[%s1 + $0x50] sm:$0xff]
    %v212 = vld [vmem:[%s1 + $0x58] sm:$0xff]
    %v213 = vld [vmem:[%s1 + $0x60] sm:$0xff]
    %v214 = vld [vmem:[%s1 + $0x68] sm:$0xff]
    %v215 = vld [vmem:[%s1 + $0x70] sm:$0xff]
    %v216 = vld [vmem:[%s1 + $0x78] sm:$0xff]
    %v217 = vld [vmem:[%s2] sm:$0x1]
    %v219 = vperm.slane %v217, 0
    %v253 = vlaneseq
    %v254 = vand.u32 %v253, 127
    %v255 = vperm.slane %v169, %v254
    %v256 = vadd.s32 %v254, 4294967288
    %v257 = vperm.slane %v170, %v256
    %vm258 = vcmask 130112
    %v259 = vsel %vm258, %v257, %v255
    %v260 = vadd.s32 %v254, 4294967280
    %v261 = vperm.slane %v171, %v260
    %vm262 = vcmask 195712
    %v263 = vsel %vm262, %v261, %v259
    %v264 = vadd.s32 %v254, 4294967272
    %v265 = vperm.slane %v172, %v264
    %vm266 = vcmask 261312
    %v267 = vsel %vm266, %v265, %v263
    %v268 = vadd.s32 %v254, 4294967264
    %v269 = vperm.slane %v173, %v268
    %vm270 = vcmask 326912
    %v271 = vsel %vm270, %v269, %v267
    %v272 = vadd.s32 %v254, 4294967256
    %v273 = vperm.slane %v174, %v272
    %vm274 = vcmask 392512
    %v275 = vsel %vm274, %v273, %v271
    %v276 = vadd.s32 %v254, 4294967248
    %v277 = vperm.slane %v175, %v276
    %vm278 = vcmask 458112
    %v279 = vsel %vm278, %v277, %v275
    %v280 = vadd.s32 %v254, 4294967240
    %v281 = vperm.slane %v176, %v280
    %vm282 = vcmask 523712
    %v283 = vsel %vm282, %v281, %v279
    %v284 = vadd.s32 %v254, 4294967232
    %v285 = vperm.slane %v177, %v284
    %vm286 = vcmask 589312
    %v287 = vsel %vm286, %v285, %v283
    %v288 = vadd.s32 %v254, 4294967224
    %v289 = vperm.slane %v178, %v288
    %vm290 = vcmask 654912
    %v291 = vsel %vm290, %v289, %v287
    %v292 = vadd.s32 %v254, 4294967216
    %v293 = vperm.slane %v179, %v292
    %vm294 = vcmask 720512
    %v295 = vsel %vm294, %v293, %v291
    %v296 = vadd.s32 %v254, 4294967208
    %v297 = vperm.slane %v180, %v296
    %vm298 = vcmask 786112
    %v299 = vsel %vm298, %v297, %v295
    %v300 = vadd.s32 %v254, 4294967200
    %v301 = vperm.slane %v181, %v300
    %vm302 = vcmask 851712
    %v303 = vsel %vm302, %v301, %v299
    %v304 = vadd.s32 %v254, 4294967192
    %v305 = vperm.slane %v182, %v304
    %vm306 = vcmask 917312
    %v307 = vsel %vm306, %v305, %v303
    %v308 = vadd.s32 %v254, 4294967184
    %v309 = vperm.slane %v183, %v308
    %vm310 = vcmask 982912
    %v311 = vsel %vm310, %v309, %v307
    %v312 = vadd.s32 %v254, 4294967176
    %v313 = vperm.slane %v184, %v312
    %vm314 = vcmask 1048512
    %v315 = vsel %vm314, %v313, %v311
    %v316 = vperm.slane %v185, %v254
    %v317 = vperm.slane %v186, %v256
    %v318 = vsel %vm258, %v317, %v316
    %v319 = vperm.slane %v187, %v260
    %v320 = vsel %vm262, %v319, %v318
    %v321 = vperm.slane %v188, %v264
    %v322 = vsel %vm266, %v321, %v320
    %v323 = vperm.slane %v189, %v268
    %v324 = vsel %vm270, %v323, %v322
    %v325 = vperm.slane %v190, %v272
    %v326 = vsel %vm274, %v325, %v324
    %v327 = vperm.slane %v191, %v276
    %v328 = vsel %vm278, %v327, %v326
    %v329 = vperm.slane %v192, %v280
    %v330 = vsel %vm282, %v329, %v328
    %v331 = vperm.slane %v193, %v284
    %v332 = vsel %vm286, %v331, %v330
    %v333 = vperm.slane %v194, %v288
    %v334 = vsel %vm290, %v333, %v332
    %v335 = vperm.slane %v195, %v292
    %v336 = vsel %vm294, %v335, %v334
    %v337 = vperm.slane %v196, %v296
    %v338 = vsel %vm298, %v337, %v336
    %v339 = vperm.slane %v197, %v300
    %v340 = vsel %vm302, %v339, %v338
    %v341 = vperm.slane %v198, %v304
    %v342 = vsel %vm306, %v341, %v340
    %v343 = vperm.slane %v199, %v308
    %v344 = vsel %vm310, %v343, %v342
    %v345 = vperm.slane %v200, %v312
    %v346 = vsel %vm314, %v345, %v344
    %vm347 = vcmask 1041409
    %v348 = vsel %vm347, %v346, %v315
    %350 = vmatpush.msra.mxu0 %v216
    %351 = vmatpush.msra.mxu0 %v215
    %352 = vmatpush.msra.mxu0 %v214
    %353 = vmatpush.msra.mxu0 %v213
    %354 = vmatpush.msra.mxu0 %v212
    %355 = vmatpush.msra.mxu0 %v211
    %356 = vmatpush.msra.mxu0 %v210
    %357 = vmatpush.msra.mxu0 %v209
    %358 = vmatpush.msra.mxu0 %v208
    %359 = vmatpush.msra.mxu0 %v207
    %360 = vmatpush.msra.mxu0 %v206
    %361 = vmatpush.msra.mxu0 %v205
    %362 = vmatpush.msra.mxu0 %v204
    %363 = vmatpush.msra.mxu0 %v203
    %364 = vmatpush.msra.mxu0 %v202
    %365 = vmatpush.msra.mxu0 %v201
    %366 = vmatmul.f32.gmra.mxu0 %v348
    %v367 = vpop.f32.mrf.mxu0
    %v368 = vadd.f32 %v219, %v367
    %369 = vdwg.mxu0
    %v370 = vmax.f32 %v368, 0.0
    %v371 = vld [vmem:[%s3] sm:$0xff]
    %v372 = vld [vmem:[%s3 + $0x8] sm:$0xff]
    %v373 = vld [vmem:[%s3 + $0x10] sm:$0xff]
    %v374 = vld [vmem:[%s3 + $0x18] sm:$0xff]
    %v375 = vld [vmem:[%s3 + $0x20] sm:$0xff]
    %v376 = vld [vmem:[%s3 + $0x28] sm:$0xff]
    %v377 = vld [vmem:[%s3 + $0x30] sm:$0xff]
    %v378 = vld [vmem:[%s3 + $0x38] sm:$0xff]
    %v379 = vld [vmem:[%s3 + $0x40] sm:$0xff]
    %v380 = vld [vmem:[%s3 + $0x48] sm:$0xff]
    %v381 = vld [vmem:[%s3 + $0x50] sm:$0xff]
    %v382 = vld [vmem:[%s3 + $0x58] sm:$0xff]
    %v383 = vld [vmem:[%s3 + $0x60] sm:$0xff]
    %v384 = vld [vmem:[%s3 + $0x68] sm:$0xff]
    %v385 = vld [vmem:[%s3 + $0x70] sm:$0xff]
    %v386 = vld [vmem:[%s3 + $0x78] sm:$0xff]
    %v387 = vld [vmem:[%s4] sm:$0xf]
    %v389 = vperm.slane %v387, 0
    %v390 = vperm.slane %v387, 1
    %v391 = vperm.slane %v387, 2
    %v392 = vperm.slane %v387, 3
    %v398 = vsel %vm65, %v370, 0
    %400 = vmatpush.msra.mxu0 0.0
    %401 = vmatpush.msra.mxu0 0.0
    %402 = vmatpush.msra.mxu0 0.0
    %403 = vmatpush.msra.mxu0 0.0
    %404 = vmatpush.msra.mxu0 0.0
    %405 = vmatpush.msra.mxu0 0.0
    %406 = vmatpush.msra.mxu0 0.0
    %407 = vmatpush.msra.mxu0 0.0
    %408 = vmatpush.msra.mxu0 0.0
    %409 = vmatpush.msra.mxu0 0.0
    %410 = vmatpush.msra.mxu0 0.0
    %411 = vmatpush.msra.mxu0 0.0
    %412 = vmatpush.msra.mxu0 %v383
    %413 = vmatpush.msra.mxu0 %v379
    %414 = vmatpush.msra.mxu0 %v375
    %415 = vmatpush.msra.mxu0 %v371
    %416 = vmatmul.f32.gmra.mxu0 %v398
    %v417 = vpop.f32.mrf.mxu0
    %v418 = vadd.f32 %v389, %v417
    %419 = vdwg.mxu0
    %420 = vmatpush.msra.mxu0 0.0
    %421 = vmatpush.msra.mxu0 0.0
    %422 = vmatpush.msra.mxu0 0.0
    %423 = vmatpush.msra.mxu0 0.0
    %424 = vmatpush.msra.mxu0 0.0
    %425 = vmatpush.msra.mxu0 0.0
    %426 = vmatpush.msra.mxu0 0.0
    %427 = vmatpush.msra.mxu0 0.0
    %428 = vmatpush.msra.mxu0 0.0
    %429 = vmatpush.msra.mxu0 0.0
    %430 = vmatpush.msra.mxu0 0.0
    %431 = vmatpush.msra.mxu0 0.0
    %432 = vmatpush.msra.mxu0 %v384
    %433 = vmatpush.msra.mxu0 %v380
    %434 = vmatpush.msra.mxu0 %v376
    %435 = vmatpush.msra.mxu0 %v372
    %436 = vmatmul.f32.gmra.mxu0 %v398
    %v437 = vpop.f32.mrf.mxu0
    %v438 = vadd.f32 %v390, %v437
    %439 = vdwg.mxu0
    %440 = vmatpush.msra.mxu0 0.0
    %441 = vmatpush.msra.mxu0 0.0
    %442 = vmatpush.msra.mxu0 0.0
    %443 = vmatpush.msra.mxu0 0.0
    %444 = vmatpush.msra.mxu0 0.0
    %445 = vmatpush.msra.mxu0 0.0
    %446 = vmatpush.msra.mxu0 0.0
    %447 = vmatpush.msra.mxu0 0.0
    %448 = vmatpush.msra.mxu0 0.0
    %449 = vmatpush.msra.mxu0 0.0
    %450 = vmatpush.msra.mxu0 0.0
    %451 = vmatpush.msra.mxu0 0.0
    %452 = vmatpush.msra.mxu0 %v385
    %453 = vmatpush.msra.mxu0 %v381
    %454 = vmatpush.msra.mxu0 %v377
    %455 = vmatpush.msra.mxu0 %v373
    %456 = vmatmul.f32.gmra.mxu0 %v398
    %v457 = vpop.f32.mrf.mxu0
    %v458 = vadd.f32 %v391, %v457
    %459 = vdwg.mxu0
    %460 = vmatpush.msra.mxu0 0.0
    %461 = vmatpush.msra.mxu0 0.0
    %462 = vmatpush.msra.mxu0 0.0
    %463 = vmatpush.msra.mxu0 0.0
    %464 = vmatpush.msra.mxu0 0.0
    %465 = vmatpush.msra.mxu0 0.0
    %466 = vmatpush.msra.mxu0 0.0
    %467 = vmatpush.msra.mxu0 0.0
    %468 = vmatpush.msra.mxu0 0.0
    %469 = vmatpush.msra.mxu0 0.0
    %470 = vmatpush.msra.mxu0 0.0
    %471 = vmatpush.msra.mxu0 0.0
    %472 = vmatpush.msra.mxu0 %v386
    %473 = vmatpush.msra.mxu0 %v382
    %474 = vmatpush.msra.mxu0 %v378
    %475 = vmatpush.msra.mxu0 %v374
    %476 = vmatmul.f32.gmra.mxu0 %v398
    %v477 = vpop.f32.mrf.mxu0
    %v478 = vadd.f32 %v392, %v477
    %479 = vdwg.mxu0
    %v480 = vxor.u32 %v418, 2147483648
    %v481 = vxor.u32 %v438, 2147483648
    %v482 = vxor.u32 %v458, 2147483648
    %v483 = vxor.u32 %v478, 2147483648
    %v484 = vmul.f32 %v480, 1.442695
    %v485 = vpow.pop %v484
    %v486 = vmul.f32 %v481, 1.442695
    %v487 = vpow.pop %v486
    %v488 = vmul.f32 %v482, 1.442695
    %v489 = vpow.pop %v488
    %v490 = vmul.f32 %v483, 1.442695
    %v491 = vpow.pop %v490
    %v492 = vadd.f32 %v485, 1.0
    %v493 = vadd.f32 %v487, 1.0
    %v494 = vadd.f32 %v489, 1.0
    %v495 = vadd.f32 %v491, 1.0
    %v496 = vrcp.pop %v492
    %v497 = vmul.f32 %v492, %v496
    %v498 = vsub.f32 1.0, %v497
    %v499 = vmul.f32 %v496, %v498
    %v500 = vadd.f32 %v496, %v499
    %vm501 = vweird.f32 %v492
    %vm502 = vweird.f32 %v496
    %vm503 = vmor %vm501, %vm502
    %v504 = vsel %vm503, %v496, %v500
    %v505 = vand.u32 2147483647, %v492
    %vm506 = vcmp.eq.f32.partialorder %v505, 8.507059e+37
    %v507 = vand.u32 %v492, 2147483648
    %v508 = vor.u32 1.1754944e-38, %v507
    %v509 = vsel %vm506, %v508, %v504
    %v510 = vmul.f32 1.0, %v509
    %v511 = vrcp.pop %v493
    %v512 = vmul.f32 %v493, %v511
    %v513 = vsub.f32 1.0, %v512
    %v514 = vmul.f32 %v511, %v513
    %v515 = vadd.f32 %v511, %v514
    %vm516 = vweird.f32 %v493
    %vm517 = vweird.f32 %v511
    %vm518 = vmor %vm516, %vm517
    %v519 = vsel %vm518, %v511, %v515
    %v520 = vand.u32 2147483647, %v493
    %vm521 = vcmp.eq.f32.partialorder %v520, 8.507059e+37
    %v522 = vand.u32 %v493, 2147483648
    %v523 = vor.u32 1.1754944e-38, %v522
    %v524 = vsel %vm521, %v523, %v519
    %v525 = vmul.f32 1.0, %v524
    %v526 = vrcp.pop %v494
    %v527 = vmul.f32 %v494, %v526
    %v528 = vsub.f32 1.0, %v527
    %v529 = vmul.f32 %v526, %v528
    %v530 = vadd.f32 %v526, %v529
    %vm531 = vweird.f32 %v494
    %vm532 = vweird.f32 %v526
    %vm533 = vmor %vm531, %vm532
    %v534 = vsel %vm533, %v526, %v530
    %v535 = vand.u32 2147483647, %v494
    %vm536 = vcmp.eq.f32.partialorder %v535, 8.507059e+37
    %v537 = vand.u32 %v494, 2147483648
    %v538 = vor.u32 1.1754944e-38, %v537
    %v539 = vsel %vm536, %v538, %v534
    %v540 = vmul.f32 1.0, %v539
    %v541 = vrcp.pop %v495
    %v542 = vmul.f32 %v495, %v541
    %v543 = vsub.f32 1.0, %v542
    %v544 = vmul.f32 %v541, %v543
    %v545 = vadd.f32 %v541, %v544
    %vm546 = vweird.f32 %v495
    %vm547 = vweird.f32 %v541
    %vm548 = vmor %vm546, %vm547
    %v549 = vsel %vm548, %v541, %v545
    %v550 = vand.u32 2147483647, %v495
    %vm551 = vcmp.eq.f32.partialorder %v550, 8.507059e+37
    %v552 = vand.u32 %v495, 2147483648
    %v553 = vor.u32 1.1754944e-38, %v552
    %v554 = vsel %vm551, %v553, %v549
    %v555 = vmul.f32 1.0, %v554
    %v556 = vadd.f32 %v510, 1.0
    %v557 = vadd.f32 %v525, 1.0
    %v558 = vadd.f32 %v540, 1.0
    %v559 = vadd.f32 %v555, 1.0
    %v560 = vmul.f32 %v348, %v556
    %v561 = vmul.f32 %v348, %v557
    %v562 = vmul.f32 %v348, %v558
    %v563 = vmul.f32 %v348, %v559
    %v564 = vld [vmem:[%s5] sm:$0xff]
    %v565 = vld [vmem:[%s5 + $0x8] sm:$0xff]
    %v566 = vld [vmem:[%s5 + $0x10] sm:$0xff]
    %v567 = vld [vmem:[%s5 + $0x18] sm:$0xff]
    %v568 = vld [vmem:[%s5 + $0x20] sm:$0xff]
    %v569 = vld [vmem:[%s5 + $0x28] sm:$0xff]
    %v570 = vld [vmem:[%s5 + $0x30] sm:$0xff]
    %v571 = vld [vmem:[%s5 + $0x38] sm:$0xff]
    %v572 = vld [vmem:[%s5 + $0x40] sm:$0xff]
    %v573 = vld [vmem:[%s5 + $0x48] sm:$0xff]
    %v574 = vld [vmem:[%s5 + $0x50] sm:$0xff]
    %v575 = vld [vmem:[%s5 + $0x58] sm:$0xff]
    %v576 = vld [vmem:[%s5 + $0x60] sm:$0xff]
    %v577 = vld [vmem:[%s5 + $0x68] sm:$0xff]
    %v578 = vld [vmem:[%s5 + $0x70] sm:$0xff]
    %v579 = vld [vmem:[%s5 + $0x78] sm:$0xff]
    %v580 = vld [vmem:[%s5 + $0x80] sm:$0xff]
    %v581 = vld [vmem:[%s5 + $0x88] sm:$0xff]
    %v582 = vld [vmem:[%s5 + $0x90] sm:$0xff]
    %v583 = vld [vmem:[%s5 + $0x98] sm:$0xff]
    %v584 = vld [vmem:[%s5 + $0xa0] sm:$0xff]
    %v585 = vld [vmem:[%s5 + $0xa8] sm:$0xff]
    %v586 = vld [vmem:[%s5 + $0xb0] sm:$0xff]
    %v587 = vld [vmem:[%s5 + $0xb8] sm:$0xff]
    %v588 = vld [vmem:[%s5 + $0xc0] sm:$0xff]
    %v589 = vld [vmem:[%s5 + $0xc8] sm:$0xff]
    %v590 = vld [vmem:[%s5 + $0xd0] sm:$0xff]
    %v591 = vld [vmem:[%s5 + $0xd8] sm:$0xff]
    %v592 = vld [vmem:[%s5 + $0xe0] sm:$0xff]
    %v593 = vld [vmem:[%s5 + $0xe8] sm:$0xff]
    %v594 = vld [vmem:[%s5 + $0xf0] sm:$0xff]
    %v595 = vld [vmem:[%s5 + $0xf8] sm:$0xff]
    %v596 = vld [vmem:[%s5 + $0x100] sm:$0xff]
    %v597 = vld [vmem:[%s5 + $0x108] sm:$0xff]
    %v598 = vld [vmem:[%s5 + $0x110] sm:$0xff]
    %v599 = vld [vmem:[%s5 + $0x118] sm:$0xff]
    %v600 = vld [vmem:[%s5 + $0x120] sm:$0xff]
    %v601 = vld [vmem:[%s5 + $0x128] sm:$0xff]
    %v602 = vld [vmem:[%s5 + $0x130] sm:$0xff]
    %v603 = vld [vmem:[%s5 + $0x138] sm:$0xff]
    %v604 = vld [vmem:[%s5 + $0x140] sm:$0xff]
    %v605 = vld [vmem:[%s5 + $0x148] sm:$0xff]
    %v606 = vld [vmem:[%s5 + $0x150] sm:$0xff]
    %v607 = vld [vmem:[%s5 + $0x158] sm:$0xff]
    %v608 = vld [vmem:[%s5 + $0x160] sm:$0xff]
    %v609 = vld [vmem:[%s5 + $0x168] sm:$0xff]
    %v610 = vld [vmem:[%s5 + $0x170] sm:$0xff]
    %v611 = vld [vmem:[%s5 + $0x178] sm:$0xff]
    %v612 = vld [vmem:[%s5 + $0x180] sm:$0xff]
    %v613 = vld [vmem:[%s5 + $0x188] sm:$0xff]
    %v614 = vld [vmem:[%s5 + $0x190] sm:$0xff]
    %v615 = vld [vmem:[%s5 + $0x198] sm:$0xff]
    %v616 = vld [vmem:[%s5 + $0x1a0] sm:$0xff]
    %v617 = vld [vmem:[%s5 + $0x1a8] sm:$0xff]
    %v618 = vld [vmem:[%s5 + $0x1b0] sm:$0xff]
    %v619 = vld [vmem:[%s5 + $0x1b8] sm:$0xff]
    %v620 = vld [vmem:[%s5 + $0x1c0] sm:$0xff]
    %v621 = vld [vmem:[%s5 + $0x1c8] sm:$0xff]
    %v622 = vld [vmem:[%s5 + $0x1d0] sm:$0xff]
    %v623 = vld [vmem:[%s5 + $0x1d8] sm:$0xff]
    %v624 = vld [vmem:[%s5 + $0x1e0] sm:$0xff]
    %v625 = vld [vmem:[%s5 + $0x1e8] sm:$0xff]
    %v626 = vld [vmem:[%s5 + $0x1f0] sm:$0xff]
    %v627 = vld [vmem:[%s5 + $0x1f8] sm:$0xff]
    %v628 = vld [vmem:[%s6] sm:$0x1]
    %v630 = vperm.slane %v628, 0
    %632 = vmatpush.msra.mxu0 %v579
    %633 = vmatpush.msra.mxu0 %v578
    %634 = vmatpush.msra.mxu0 %v577
    %635 = vmatpush.msra.mxu0 %v576
    %636 = vmatpush.msra.mxu0 %v575
    %637 = vmatpush.msra.mxu0 %v574
    %638 = vmatpush.msra.mxu0 %v573
    %639 = vmatpush.msra.mxu0 %v572
    %640 = vmatpush.msra.mxu0 %v571
    %641 = vmatpush.msra.mxu0 %v570
    %642 = vmatpush.msra.mxu0 %v569
    %643 = vmatpush.msra.mxu0 %v568
    %644 = vmatpush.msra.mxu0 %v567
    %645 = vmatpush.msra.mxu0 %v566
    %646 = vmatpush.msra.mxu0 %v565
    %647 = vmatpush.msra.mxu0 %v564
    %648 = vmatmul.f32.gmra.mxu0 %v560
    %v649 = vpop.f32.mrf.mxu0
    %v650 = vadd.f32 %v630, %v649
    %651 = vdwg.mxu0
    %652 = vmatpush.msra.mxu0 %v595
    %653 = vmatpush.msra.mxu0 %v594
    %654 = vmatpush.msra.mxu0 %v593
    %655 = vmatpush.msra.mxu0 %v592
    %656 = vmatpush.msra.mxu0 %v591
    %657 = vmatpush.msra.mxu0 %v590
    %658 = vmatpush.msra.mxu0 %v589
    %659 = vmatpush.msra.mxu0 %v588
    %660 = vmatpush.msra.mxu0 %v587
    %661 = vmatpush.msra.mxu0 %v586
    %662 = vmatpush.msra.mxu0 %v585
    %663 = vmatpush.msra.mxu0 %v584
    %664 = vmatpush.msra.mxu0 %v583
    %665 = vmatpush.msra.mxu0 %v582
    %666 = vmatpush.msra.mxu0 %v581
    %667 = vmatpush.msra.mxu0 %v580
    %668 = vmatmul.f32.gmra.mxu0 %v561
    %v669 = vpop.f32.mrf.mxu0
    %v670 = vadd.f32 %v650, %v669
    %671 = vdwg.mxu0
    %672 = vmatpush.msra.mxu0 %v611
    %673 = vmatpush.msra.mxu0 %v610
    %674 = vmatpush.msra.mxu0 %v609
    %675 = vmatpush.msra.mxu0 %v608
    %676 = vmatpush.msra.mxu0 %v607
    %677 = vmatpush.msra.mxu0 %v606
    %678 = vmatpush.msra.mxu0 %v605
    %679 = vmatpush.msra.mxu0 %v604
    %680 = vmatpush.msra.mxu0 %v603
    %681 = vmatpush.msra.mxu0 %v602
    %682 = vmatpush.msra.mxu0 %v601
    %683 = vmatpush.msra.mxu0 %v600
    %684 = vmatpush.msra.mxu0 %v599
    %685 = vmatpush.msra.mxu0 %v598
    %686 = vmatpush.msra.mxu0 %v597
    %687 = vmatpush.msra.mxu0 %v596
    %688 = vmatmul.f32.gmra.mxu0 %v562
    %v689 = vpop.f32.mrf.mxu0
    %v690 = vadd.f32 %v670, %v689
    %691 = vdwg.mxu0
    %692 = vmatpush.msra.mxu0 %v627
    %693 = vmatpush.msra.mxu0 %v626
    %694 = vmatpush.msra.mxu0 %v625
    %695 = vmatpush.msra.mxu0 %v624
    %696 = vmatpush.msra.mxu0 %v623
    %697 = vmatpush.msra.mxu0 %v622
    %698 = vmatpush.msra.mxu0 %v621
    %699 = vmatpush.msra.mxu0 %v620
    %700 = vmatpush.msra.mxu0 %v619
    %701 = vmatpush.msra.mxu0 %v618
    %702 = vmatpush.msra.mxu0 %v617
    %703 = vmatpush.msra.mxu0 %v616
    %704 = vmatpush.msra.mxu0 %v615
    %705 = vmatpush.msra.mxu0 %v614
    %706 = vmatpush.msra.mxu0 %v613
    %707 = vmatpush.msra.mxu0 %v612
    %708 = vmatmul.f32.gmra.mxu0 %v563
    %v709 = vpop.f32.mrf.mxu0
    %v710 = vadd.f32 %v690, %v709
    %711 = vdwg.mxu0
    %v713 = vrot.slane %v510, 1
    %v716 = vrot.slane %v525, 1
    %v718 = vrot.slane %v540, 1
    %v720 = vrot.slane %v555, 1
    %v721 = vperm.slane %v525, 0
    %v722 = vperm.slane %v716, 0
    %v725 = vperm.slane %v540, 0
    %v726 = vperm.slane %v718, 0
    %v729 = vperm.slane %v555, 0
    %v730 = vperm.slane %v720, 0
    %vm733 = vcmask 1040384
    %v734 = vsel %vm733, %v510, %v721
    %v735 = vsel %vm733, %v713, %v722
    %vm736 = vcmask 1041408
    %v737 = vsel %vm736, %v734, %v725
    %v738 = vsel %vm736, %v735, %v726
    %vm739 = vcmask 1042432
    %v740 = vsel %vm739, %v737, %v729
    %v741 = vsel %vm739, %v738, %v730
    %v743 = vrot.slane %v710, 1
    %v745 = vperm.slane %v710, 0
    %v746 = vperm.slane %v743, 0
    %747 = vrot.lane.b32.xlu0 %v745, 124
    %v748 = vpop.permute.xlu0 %747
    %749 = vrot.lane.b32.xlu0 %v746, 124
    %v750 = vpop.permute.xlu0 %749
    %753 = vrot.lane.b32.xlu0 %v745, 120
    %v754 = vpop.permute.xlu0 %753
    %755 = vrot.lane.b32.xlu0 %v746, 120
    %v756 = vpop.permute.xlu0 %755
    %759 = vrot.lane.b32.xlu0 %v745, 116
    %v760 = vpop.permute.xlu0 %759
    %761 = vrot.lane.b32.xlu0 %v746, 116
    %v762 = vpop.permute.xlu0 %761
    %v765 = vsel %vm733, %v710, %v748
    %v766 = vsel %vm733, %v743, %v750
    %v767 = vsel %vm736, %v765, %v754
    %v768 = vsel %vm736, %v766, %v756
    %v769 = vsel %vm739, %v767, %v760
    %v770 = vsel %vm739, %v768, %v762
    %vm771 = vcmp.lt.s32.totalorder %v254, 2
    %v772 = vxor.u32 %v769, 2147483648
    %v773 = vxor.u32 %v770, 2147483648
    %v774 = vmul.f32 %v772, 1.442695
    %v775 = vpow.pop %v774
    %v776 = vmul.f32 %v773, 1.442695
    %v777 = vpow.pop %v776
    %v778 = vadd.f32 %v775, 1.0
    %v779 = vadd.f32 %v777, 1.0
    %v780 = vrcp.pop %v778
    %v781 = vmul.f32 %v778, %v780
    %v782 = vsub.f32 1.0, %v781
    %v783 = vmul.f32 %v780, %v782
    %v784 = vadd.f32 %v780, %v783
    %vm785 = vweird.f32 %v778
    %vm786 = vweird.f32 %v780
    %vm787 = vmor %vm785, %vm786
    %v788 = vsel %vm787, %v780, %v784
    %v789 = vand.u32 2147483647, %v778
    %vm790 = vcmp.eq.f32.partialorder %v789, 8.507059e+37
    %v791 = vand.u32 %v778, 2147483648
    %v792 = vor.u32 1.1754944e-38, %v791
    %v793 = vsel %vm790, %v792, %v788
    %v794 = vmul.f32 1.0, %v793
    %v795 = vrcp.pop %v779
    %v796 = vmul.f32 %v779, %v795
    %v797 = vsub.f32 1.0, %v796
    %v798 = vmul.f32 %v795, %v797
    %v799 = vadd.f32 %v795, %v798
    %vm800 = vweird.f32 %v779
    %vm801 = vweird.f32 %v795
    %vm802 = vmor %vm800, %vm801
    %v803 = vsel %vm802, %v795, %v799
    %v804 = vand.u32 2147483647, %v779
    %vm805 = vcmp.eq.f32.partialorder %v804, 8.507059e+37
    %v806 = vand.u32 %v779, 2147483648
    %v807 = vor.u32 1.1754944e-38, %v806
    %v808 = vsel %vm805, %v807, %v803
    %v809 = vmul.f32 1.0, %v808
    %v810 = vtanh.pop %v769
    %v811 = vtanh.pop %v770
    %v812 = vsel %vm771, %v794, %v810
    %v813 = vsel %vm771, %v809, %v811
    %v814 = vlaneseq
    %v815 = vshrl.u32 %v814, 7
    %v816 = vcvt.s32.f32 %v815
    %v817 = vmul.f32 %v816, 2.0
    %v818 = vadd.f32 %v817, 1.0
    %v819 = vrcp.pop 8.0
    %v820 = vmul.f32 8.0, %v819
    %v821 = vsub.f32 1.0, %v820
    %v822 = vmul.f32 %v819, %v821
    %v823 = vadd.f32 %v819, %v822
    %vm824 = vweird.f32 %v819
    %v825 = vsel %vm824, %v819, %v823
    %v826 = vmul.f32 %v818, %v825
    %v827 = vsub.f32 %v826, 1.0
    %v830 = vrot.slane %v812, 1
    %v831 = vrot.slane %v812, 2
    %v832 = vrot.slane %v812, 3
    %v833 = vrot.slane %v813, 1
    %v834 = vrot.slane %v813, 2
    %v835 = vrot.slane %v813, 3
    %v836 = vperm.slane %v812, 0
    %v837 = vperm.slane %v830, 0
    %v838 = vperm.slane %v831, 0
    %v839 = vperm.slane %v832, 0
    %v840 = vperm.slane %v813, 0
    %v841 = vperm.slane %v833, 0
    %v842 = vperm.slane %v834, 0
    %v843 = vperm.slane %v835, 0
    %v852 = vmul.f32 %v836, %v827
    %v853 = vmul.f32 %v837, %v827
    %v854 = vmul.f32 %v838, %v827
    %v855 = vmul.f32 %v839, %v827
    %v856 = vmul.f32 %v840, %v827
    %v857 = vmul.f32 %v841, %v827
    %v858 = vmul.f32 %v842, %v827
    %v859 = vmul.f32 %v843, %v827
    %860 = vrot.lane.b32.xlu0 %v836, 126
    %v861 = vpop.permute.xlu0 %860
    %862 = vrot.lane.b32.xlu0 %v837, 126
    %v863 = vpop.permute.xlu0 %862
    %864 = vrot.lane.b32.xlu0 %v838, 126
    %v865 = vpop.permute.xlu0 %864
    %866 = vrot.lane.b32.xlu0 %v839, 126
    %v867 = vpop.permute.xlu0 %866
    %868 = vrot.lane.b32.xlu0 %v840, 126
    %v869 = vpop.permute.xlu0 %868
    %870 = vrot.lane.b32.xlu0 %v841, 126
    %v871 = vpop.permute.xlu0 %870
    %872 = vrot.lane.b32.xlu0 %v842, 126
    %v873 = vpop.permute.xlu0 %872
    %874 = vrot.lane.b32.xlu0 %v843, 126
    %v875 = vpop.permute.xlu0 %874
    %v884 = vadd.f32 %v852, %v861
    %v885 = vadd.f32 %v853, %v863
    %v886 = vadd.f32 %v854, %v865
    %v887 = vadd.f32 %v855, %v867
    %v888 = vadd.f32 %v856, %v869
    %v889 = vadd.f32 %v857, %v871
    %v890 = vadd.f32 %v858, %v873
    %v891 = vadd.f32 %v859, %v875
    %v892 = vadd.f32 %v884, 1.0
    %v893 = vadd.f32 %v885, 1.0
    %v894 = vadd.f32 %v886, 1.0
    %v895 = vadd.f32 %v887, 1.0
    %v896 = vadd.f32 %v888, 1.0
    %v897 = vadd.f32 %v889, 1.0
    %v898 = vadd.f32 %v890, 1.0
    %v899 = vadd.f32 %v891, 1.0
    %v900 = vmul.f32 %v892, 8.0
    %v901 = vmul.f32 %v893, 8.0
    %v902 = vmul.f32 %v894, 8.0
    %v903 = vmul.f32 %v895, 8.0
    %v904 = vmul.f32 %v896, 8.0
    %v905 = vmul.f32 %v897, 8.0
    %v906 = vmul.f32 %v898, 8.0
    %v907 = vmul.f32 %v899, 8.0
    %v908 = vsub.f32 %v900, 1.0
    %v909 = vsub.f32 %v901, 1.0
    %v910 = vsub.f32 %v902, 1.0
    %v911 = vsub.f32 %v903, 1.0
    %v912 = vsub.f32 %v904, 1.0
    %v913 = vsub.f32 %v905, 1.0
    %v914 = vsub.f32 %v906, 1.0
    %v915 = vsub.f32 %v907, 1.0
    %v916 = vmul.f32 %v908, 0.5
    %v917 = vmul.f32 %v909, 0.5
    %v918 = vmul.f32 %v910, 0.5
    %v919 = vmul.f32 %v911, 0.5
    %v920 = vmul.f32 %v912, 0.5
    %v921 = vmul.f32 %v913, 0.5
    %v922 = vmul.f32 %v914, 0.5
    %v923 = vmul.f32 %v915, 0.5
    %v924 = vmax.f32 %v916, 0.0
    %v925 = vmax.f32 %v917, 0.0
    %v926 = vmax.f32 %v918, 0.0
    %v927 = vmax.f32 %v919, 0.0
    %v928 = vmax.f32 %v920, 0.0
    %v929 = vmax.f32 %v921, 0.0
    %v930 = vmax.f32 %v922, 0.0
    %v931 = vmax.f32 %v923, 0.0
    %v932 = vmin.f32 %v924, 7.0
    %v933 = vmin.f32 %v925, 7.0
    %v934 = vmin.f32 %v926, 7.0
    %v935 = vmin.f32 %v927, 7.0
    %v936 = vmin.f32 %v928, 7.0
    %v937 = vmin.f32 %v929, 7.0
    %v938 = vmin.f32 %v930, 7.0
    %v939 = vmin.f32 %v931, 7.0
    %v940 = vfloor.f32 %v932
    %v941 = vfloor.f32 %v933
    %v942 = vfloor.f32 %v934
    %v943 = vfloor.f32 %v935
    %v944 = vfloor.f32 %v936
    %v945 = vfloor.f32 %v937
    %v946 = vfloor.f32 %v938
    %v947 = vfloor.f32 %v939
    %v948 = vsub.f32 %v932, %v940
    %v949 = vsub.f32 %v933, %v941
    %v950 = vsub.f32 %v934, %v942
    %v951 = vsub.f32 %v935, %v943
    %v952 = vsub.f32 %v936, %v944
    %v953 = vsub.f32 %v937, %v945
    %v954 = vsub.f32 %v938, %v946
    %v955 = vsub.f32 %v939, %v947
    %v956 = vadd.f32 %v940, 1.0
    %v957 = vadd.f32 %v941, 1.0
    %v958 = vadd.f32 %v942, 1.0
    %v959 = vadd.f32 %v943, 1.0
    %v960 = vadd.f32 %v944, 1.0
    %v961 = vadd.f32 %v945, 1.0
    %v962 = vadd.f32 %v946, 1.0
    %v963 = vadd.f32 %v947, 1.0
    %v964 = vmin.f32 %v956, 7.0
    %v965 = vmin.f32 %v957, 7.0
    %v966 = vmin.f32 %v958, 7.0
    %v967 = vmin.f32 %v959, 7.0
    %v968 = vmin.f32 %v960, 7.0
    %v969 = vmin.f32 %v961, 7.0
    %v970 = vmin.f32 %v962, 7.0
    %v971 = vmin.f32 %v963, 7.0
    %v972 = vcvt.s32.f32 %v254
    %974 = vset.pattern.permute.xlu0 1
    %975 = vperm.xlu0 %974, %v940
    %v976 = vpop.permute.xlu0 %975
    %979 = vset.pattern.permute.xlu0 1
    %980 = vperm.xlu0 %979, %v941
    %v981 = vpop.permute.xlu0 %980
    %984 = vset.pattern.permute.xlu0 1
    %985 = vperm.xlu0 %984, %v942
    %v986 = vpop.permute.xlu0 %985
    %989 = vset.pattern.permute.xlu0 1
    %990 = vperm.xlu0 %989, %v943
    %v991 = vpop.permute.xlu0 %990
    %994 = vset.pattern.permute.xlu0 1
    %995 = vperm.xlu0 %994, %v944
    %v996 = vpop.permute.xlu0 %995
    %999 = vset.pattern.permute.xlu0 1
    %1000 = vperm.xlu0 %999, %v945
    %v1001 = vpop.permute.xlu0 %1000
    %1004 = vset.pattern.permute.xlu0 1
    %1005 = vperm.xlu0 %1004, %v946
    %v1006 = vpop.permute.xlu0 %1005
    %1009 = vset.pattern.permute.xlu0 1
    %1010 = vperm.xlu0 %1009, %v947
    %v1011 = vpop.permute.xlu0 %1010
    %vm1013 = vcmp.eq.f32.partialorder %v972, %v976
    %vm1014 = vcmp.eq.f32.partialorder %v972, %v981
    %vm1015 = vcmp.eq.f32.partialorder %v972, %v986
    %vm1016 = vcmp.eq.f32.partialorder %v972, %v991
    %vm1017 = vcmp.eq.f32.partialorder %v972, %v996
    %vm1018 = vcmp.eq.f32.partialorder %v972, %v1001
    %vm1019 = vcmp.eq.f32.partialorder %v972, %v1006
    %vm1020 = vcmp.eq.f32.partialorder %v972, %v1011
    %v1021 = vsub.f32 1.0, %v948
    %v1022 = vsub.f32 1.0, %v949
    %v1023 = vsub.f32 1.0, %v950
    %v1024 = vsub.f32 1.0, %v951
    %v1025 = vsub.f32 1.0, %v952
    %v1026 = vsub.f32 1.0, %v953
    %v1027 = vsub.f32 1.0, %v954
    %v1028 = vsub.f32 1.0, %v955
    %1030 = vset.pattern.permute.xlu0 1
    %1031 = vperm.xlu0 %1030, %v1021
    %v1032 = vpop.permute.xlu0 %1031
    %1035 = vset.pattern.permute.xlu0 1
    %1036 = vperm.xlu0 %1035, %v1022
    %v1037 = vpop.permute.xlu0 %1036
    %1040 = vset.pattern.permute.xlu0 1
    %1041 = vperm.xlu0 %1040, %v1023
    %v1042 = vpop.permute.xlu0 %1041
    %1045 = vset.pattern.permute.xlu0 1
    %1046 = vperm.xlu0 %1045, %v1024
    %v1047 = vpop.permute.xlu0 %1046
    %1050 = vset.pattern.permute.xlu0 1
    %1051 = vperm.xlu0 %1050, %v1025
    %v1052 = vpop.permute.xlu0 %1051
    %1055 = vset.pattern.permute.xlu0 1
    %1056 = vperm.xlu0 %1055, %v1026
    %v1057 = vpop.permute.xlu0 %1056
    %1060 = vset.pattern.permute.xlu0 1
    %1061 = vperm.xlu0 %1060, %v1027
    %v1062 = vpop.permute.xlu0 %1061
    %1065 = vset.pattern.permute.xlu0 1
    %1066 = vperm.xlu0 %1065, %v1028
    %v1067 = vpop.permute.xlu0 %1066
    %v1069 = vsel %vm1013, %v1032, 0.0
    %v1070 = vsel %vm1014, %v1037, 0.0
    %v1071 = vsel %vm1015, %v1042, 0.0
    %v1072 = vsel %vm1016, %v1047, 0.0
    %v1073 = vsel %vm1017, %v1052, 0.0
    %v1074 = vsel %vm1018, %v1057, 0.0
    %v1075 = vsel %vm1019, %v1062, 0.0
    %v1076 = vsel %vm1020, %v1067, 0.0
    %1078 = vset.pattern.permute.xlu0 1
    %1079 = vperm.xlu0 %1078, %v964
    %v1080 = vpop.permute.xlu0 %1079
    %1083 = vset.pattern.permute.xlu0 1
    %1084 = vperm.xlu0 %1083, %v965
    %v1085 = vpop.permute.xlu0 %1084
    %1088 = vset.pattern.permute.xlu0 1
    %1089 = vperm.xlu0 %1088, %v966
    %v1090 = vpop.permute.xlu0 %1089
    %1093 = vset.pattern.permute.xlu0 1
    %1094 = vperm.xlu0 %1093, %v967
    %v1095 = vpop.permute.xlu0 %1094
    %1098 = vset.pattern.permute.xlu0 1
    %1099 = vperm.xlu0 %1098, %v968
    %v1100 = vpop.permute.xlu0 %1099
    %1103 = vset.pattern.permute.xlu0 1
    %1104 = vperm.xlu0 %1103, %v969
    %v1105 = vpop.permute.xlu0 %1104
    %1108 = vset.pattern.permute.xlu0 1
    %1109 = vperm.xlu0 %1108, %v970
    %v1110 = vpop.permute.xlu0 %1109
    %1113 = vset.pattern.permute.xlu0 1
    %1114 = vperm.xlu0 %1113, %v971
    %v1115 = vpop.permute.xlu0 %1114
    %vm1117 = vcmp.eq.f32.partialorder %v972, %v1080
    %vm1118 = vcmp.eq.f32.partialorder %v972, %v1085
    %vm1119 = vcmp.eq.f32.partialorder %v972, %v1090
    %vm1120 = vcmp.eq.f32.partialorder %v972, %v1095
    %vm1121 = vcmp.eq.f32.partialorder %v972, %v1100
    %vm1122 = vcmp.eq.f32.partialorder %v972, %v1105
    %vm1123 = vcmp.eq.f32.partialorder %v972, %v1110
    %vm1124 = vcmp.eq.f32.partialorder %v972, %v1115
    %1126 = vset.pattern.permute.xlu0 1
    %1127 = vperm.xlu0 %1126, %v948
    %v1128 = vpop.permute.xlu0 %1127
    %1131 = vset.pattern.permute.xlu0 1
    %1132 = vperm.xlu0 %1131, %v949
    %v1133 = vpop.permute.xlu0 %1132
    %1136 = vset.pattern.permute.xlu0 1
    %1137 = vperm.xlu0 %1136, %v950
    %v1138 = vpop.permute.xlu0 %1137
    %1141 = vset.pattern.permute.xlu0 1
    %1142 = vperm.xlu0 %1141, %v951
    %v1143 = vpop.permute.xlu0 %1142
    %1146 = vset.pattern.permute.xlu0 1
    %1147 = vperm.xlu0 %1146, %v952
    %v1148 = vpop.permute.xlu0 %1147
    %1151 = vset.pattern.permute.xlu0 1
    %1152 = vperm.xlu0 %1151, %v953
    %v1153 = vpop.permute.xlu0 %1152
    %1156 = vset.pattern.permute.xlu0 1
    %1157 = vperm.xlu0 %1156, %v954
    %v1158 = vpop.permute.xlu0 %1157
    %1161 = vset.pattern.permute.xlu0 1
    %1162 = vperm.xlu0 %1161, %v955
    %v1163 = vpop.permute.xlu0 %1162
    %v1165 = vsel %vm1117, %v1128, 0.0
    %v1166 = vsel %vm1118, %v1133, 0.0
    %v1167 = vsel %vm1119, %v1138, 0.0
    %v1168 = vsel %vm1120, %v1143, 0.0
    %v1169 = vsel %vm1121, %v1148, 0.0
    %v1170 = vsel %vm1122, %v1153, 0.0
    %v1171 = vsel %vm1123, %v1158, 0.0
    %v1172 = vsel %vm1124, %v1163, 0.0
    %v1173 = vadd.f32 %v1069, %v1165
    %v1174 = vadd.f32 %v1070, %v1166
    %v1175 = vadd.f32 %v1071, %v1167
    %v1176 = vadd.f32 %v1072, %v1168
    %v1177 = vadd.f32 %v1073, %v1169
    %v1178 = vadd.f32 %v1074, %v1170
    %v1179 = vadd.f32 %v1075, %v1171
    %v1180 = vadd.f32 %v1076, %v1172
    %vm1181 = vcmask 64512
    %v1182 = vsel %vm1181, %v1173, 0.0
    %v1183 = vrot.slane %v1182, 4
    %v1184 = vadd.f32 %v1182, %v1183
    %v1185 = vrot.slane %v1184, 2
    %v1186 = vadd.f32 %v1184, %v1185
    %v1187 = vrot.slane %v1186, 1
    %v1188 = vadd.f32 %v1186, %v1187
    %v1189 = vsel %vm1181, %v1174, 0.0
    %v1190 = vrot.slane %v1189, 4
    %v1191 = vadd.f32 %v1189, %v1190
    %v1192 = vrot.slane %v1191, 2
    %v1193 = vadd.f32 %v1191, %v1192
    %v1194 = vrot.slane %v1193, 1
    %v1195 = vadd.f32 %v1193, %v1194
    %v1196 = vsel %vm1181, %v1175, 0.0
    %v1197 = vrot.slane %v1196, 4
    %v1198 = vadd.f32 %v1196, %v1197
    %v1199 = vrot.slane %v1198, 2
    %v1200 = vadd.f32 %v1198, %v1199
    %v1201 = vrot.slane %v1200, 1
    %v1202 = vadd.f32 %v1200, %v1201
    %v1203 = vsel %vm1181, %v1176, 0.0
    %v1204 = vrot.slane %v1203, 4
    %v1205 = vadd.f32 %v1203, %v1204
    %v1206 = vrot.slane %v1205, 2
    %v1207 = vadd.f32 %v1205, %v1206
    %v1208 = vrot.slane %v1207, 1
    %v1209 = vadd.f32 %v1207, %v1208
    %v1210 = vsel %vm1181, %v1177, 0.0
    %v1211 = vrot.slane %v1210, 4
    %v1212 = vadd.f32 %v1210, %v1211
    %v1213 = vrot.slane %v1212, 2
    %v1214 = vadd.f32 %v1212, %v1213
    %v1215 = vrot.slane %v1214, 1
    %v1216 = vadd.f32 %v1214, %v1215
    %v1217 = vsel %vm1181, %v1178, 0.0
    %v1218 = vrot.slane %v1217, 4
    %v1219 = vadd.f32 %v1217, %v1218
    %v1220 = vrot.slane %v1219, 2
    %v1221 = vadd.f32 %v1219, %v1220
    %v1222 = vrot.slane %v1221, 1
    %v1223 = vadd.f32 %v1221, %v1222
    %v1224 = vsel %vm1181, %v1179, 0.0
    %v1225 = vrot.slane %v1224, 4
    %v1226 = vadd.f32 %v1224, %v1225
    %v1227 = vrot.slane %v1226, 2
    %v1228 = vadd.f32 %v1226, %v1227
    %v1229 = vrot.slane %v1228, 1
    %v1230 = vadd.f32 %v1228, %v1229
    %v1231 = vsel %vm1181, %v1180, 0.0
    %v1232 = vrot.slane %v1231, 4
    %v1233 = vadd.f32 %v1231, %v1232
    %v1234 = vrot.slane %v1233, 2
    %v1235 = vadd.f32 %v1233, %v1234
    %v1236 = vrot.slane %v1235, 1
    %v1237 = vadd.f32 %v1235, %v1236
    %v1238 = vmul.f32 %v1188, %v825
    %v1239 = vmul.f32 %v1195, %v825
    %v1240 = vmul.f32 %v1202, %v825
    %v1241 = vmul.f32 %v1209, %v825
    %v1242 = vmul.f32 %v1216, %v825
    %v1243 = vmul.f32 %v1223, %v825
    %v1244 = vmul.f32 %v1230, %v825
    %v1245 = vmul.f32 %v1237, %v825
    %v1246 = vrcp.pop 4.0
    %v1247 = vmul.f32 4.0, %v1246
    %v1248 = vsub.f32 1.0, %v1247
    %v1249 = vmul.f32 %v1246, %v1248
    %v1250 = vadd.f32 %v1246, %v1249
    %vm1251 = vweird.f32 %v1246
    %v1252 = vsel %vm1251, %v1246, %v1250
    %v1253 = vmul.f32 %v818, %v1252
    %v1254 = vsub.f32 %v1253, 1.0
    %v1255 = vmul.f32 %v836, %v1254
    %v1256 = vmul.f32 %v837, %v1254
    %v1257 = vmul.f32 %v838, %v1254
    %v1258 = vmul.f32 %v839, %v1254
    %v1259 = vmul.f32 %v840, %v1254
    %v1260 = vmul.f32 %v841, %v1254
    %v1261 = vmul.f32 %v842, %v1254
    %v1262 = vmul.f32 %v843, %v1254
    %v1263 = vadd.f32 %v1255, %v861
    %v1264 = vadd.f32 %v1256, %v863
    %v1265 = vadd.f32 %v1257, %v865
    %v1266 = vadd.f32 %v1258, %v867
    %v1267 = vadd.f32 %v1259, %v869
    %v1268 = vadd.f32 %v1260, %v871
    %v1269 = vadd.f32 %v1261, %v873
    %v1270 = vadd.f32 %v1262, %v875
    %v1271 = vadd.f32 %v1263, 1.0
    %v1272 = vadd.f32 %v1264, 1.0
    %v1273 = vadd.f32 %v1265, 1.0
    %v1274 = vadd.f32 %v1266, 1.0
    %v1275 = vadd.f32 %v1267, 1.0
    %v1276 = vadd.f32 %v1268, 1.0
    %v1277 = vadd.f32 %v1269, 1.0
    %v1278 = vadd.f32 %v1270, 1.0
    %v1279 = vmul.f32 %v1271, 4.0
    %v1280 = vmul.f32 %v1272, 4.0
    %v1281 = vmul.f32 %v1273, 4.0
    %v1282 = vmul.f32 %v1274, 4.0
    %v1283 = vmul.f32 %v1275, 4.0
    %v1284 = vmul.f32 %v1276, 4.0
    %v1285 = vmul.f32 %v1277, 4.0
    %v1286 = vmul.f32 %v1278, 4.0
    %v1287 = vsub.f32 %v1279, 1.0
    %v1288 = vsub.f32 %v1280, 1.0
    %v1289 = vsub.f32 %v1281, 1.0
    %v1290 = vsub.f32 %v1282, 1.0
    %v1291 = vsub.f32 %v1283, 1.0
    %v1292 = vsub.f32 %v1284, 1.0
    %v1293 = vsub.f32 %v1285, 1.0
    %v1294 = vsub.f32 %v1286, 1.0
    %v1295 = vmul.f32 %v1287, 0.5
    %v1296 = vmul.f32 %v1288, 0.5
    %v1297 = vmul.f32 %v1289, 0.5
    %v1298 = vmul.f32 %v1290, 0.5
    %v1299 = vmul.f32 %v1291, 0.5
    %v1300 = vmul.f32 %v1292, 0.5
    %v1301 = vmul.f32 %v1293, 0.5
    %v1302 = vmul.f32 %v1294, 0.5
    %v1303 = vmax.f32 %v1295, 0.0
    %v1304 = vmax.f32 %v1296, 0.0
    %v1305 = vmax.f32 %v1297, 0.0
    %v1306 = vmax.f32 %v1298, 0.0
    %v1307 = vmax.f32 %v1299, 0.0
    %v1308 = vmax.f32 %v1300, 0.0
    %v1309 = vmax.f32 %v1301, 0.0
    %v1310 = vmax.f32 %v1302, 0.0
    %v1311 = vmin.f32 %v1303, 3.0
    %v1312 = vmin.f32 %v1304, 3.0
    %v1313 = vmin.f32 %v1305, 3.0
    %v1314 = vmin.f32 %v1306, 3.0
    %v1315 = vmin.f32 %v1307, 3.0
    %v1316 = vmin.f32 %v1308, 3.0
    %v1317 = vmin.f32 %v1309, 3.0
    %v1318 = vmin.f32 %v1310, 3.0
    %v1319 = vfloor.f32 %v1311
    %v1320 = vfloor.f32 %v1312
    %v1321 = vfloor.f32 %v1313
    %v1322 = vfloor.f32 %v1314
    %v1323 = vfloor.f32 %v1315
    %v1324 = vfloor.f32 %v1316
    %v1325 = vfloor.f32 %v1317
    %v1326 = vfloor.f32 %v1318
    %v1327 = vsub.f32 %v1311, %v1319
    %v1328 = vsub.f32 %v1312, %v1320
    %v1329 = vsub.f32 %v1313, %v1321
    %v1330 = vsub.f32 %v1314, %v1322
    %v1331 = vsub.f32 %v1315, %v1323
    %v1332 = vsub.f32 %v1316, %v1324
    %v1333 = vsub.f32 %v1317, %v1325
    %v1334 = vsub.f32 %v1318, %v1326
    %v1335 = vadd.f32 %v1319, 1.0
    %v1336 = vadd.f32 %v1320, 1.0
    %v1337 = vadd.f32 %v1321, 1.0
    %v1338 = vadd.f32 %v1322, 1.0
    %v1339 = vadd.f32 %v1323, 1.0
    %v1340 = vadd.f32 %v1324, 1.0
    %v1341 = vadd.f32 %v1325, 1.0
    %v1342 = vadd.f32 %v1326, 1.0
    %v1343 = vmin.f32 %v1335, 3.0
    %v1344 = vmin.f32 %v1336, 3.0
    %v1345 = vmin.f32 %v1337, 3.0
    %v1346 = vmin.f32 %v1338, 3.0
    %v1347 = vmin.f32 %v1339, 3.0
    %v1348 = vmin.f32 %v1340, 3.0
    %v1349 = vmin.f32 %v1341, 3.0
    %v1350 = vmin.f32 %v1342, 3.0
    %1352 = vset.pattern.permute.xlu0 0
    %1353 = vperm.xlu0 %1352, %v1319
    %v1354 = vpop.permute.xlu0 %1353
    %1357 = vset.pattern.permute.xlu0 0
    %1358 = vperm.xlu0 %1357, %v1320
    %v1359 = vpop.permute.xlu0 %1358
    %1362 = vset.pattern.permute.xlu0 0
    %1363 = vperm.xlu0 %1362, %v1321
    %v1364 = vpop.permute.xlu0 %1363
    %1367 = vset.pattern.permute.xlu0 0
    %1368 = vperm.xlu0 %1367, %v1322
    %v1369 = vpop.permute.xlu0 %1368
    %1372 = vset.pattern.permute.xlu0 0
    %1373 = vperm.xlu0 %1372, %v1323
    %v1374 = vpop.permute.xlu0 %1373
    %1377 = vset.pattern.permute.xlu0 0
    %1378 = vperm.xlu0 %1377, %v1324
    %v1379 = vpop.permute.xlu0 %1378
    %1382 = vset.pattern.permute.xlu0 0
    %1383 = vperm.xlu0 %1382, %v1325
    %v1384 = vpop.permute.xlu0 %1383
    %1387 = vset.pattern.permute.xlu0 0
    %1388 = vperm.xlu0 %1387, %v1326
    %v1389 = vpop.permute.xlu0 %1388
    %vm1391 = vcmp.eq.f32.partialorder %v972, %v1354
    %vm1392 = vcmp.eq.f32.partialorder %v972, %v1359
    %vm1393 = vcmp.eq.f32.partialorder %v972, %v1364
    %vm1394 = vcmp.eq.f32.partialorder %v972, %v1369
    %vm1395 = vcmp.eq.f32.partialorder %v972, %v1374
    %vm1396 = vcmp.eq.f32.partialorder %v972, %v1379
    %vm1397 = vcmp.eq.f32.partialorder %v972, %v1384
    %vm1398 = vcmp.eq.f32.partialorder %v972, %v1389
    %v1399 = vsub.f32 1.0, %v1327
    %v1400 = vsub.f32 1.0, %v1328
    %v1401 = vsub.f32 1.0, %v1329
    %v1402 = vsub.f32 1.0, %v1330
    %v1403 = vsub.f32 1.0, %v1331
    %v1404 = vsub.f32 1.0, %v1332
    %v1405 = vsub.f32 1.0, %v1333
    %v1406 = vsub.f32 1.0, %v1334
    %1408 = vset.pattern.permute.xlu0 0
    %1409 = vperm.xlu0 %1408, %v1399
    %v1410 = vpop.permute.xlu0 %1409
    %1413 = vset.pattern.permute.xlu0 0
    %1414 = vperm.xlu0 %1413, %v1400
    %v1415 = vpop.permute.xlu0 %1414
    %1418 = vset.pattern.permute.xlu0 0
    %1419 = vperm.xlu0 %1418, %v1401
    %v1420 = vpop.permute.xlu0 %1419
    %1423 = vset.pattern.permute.xlu0 0
    %1424 = vperm.xlu0 %1423, %v1402
    %v1425 = vpop.permute.xlu0 %1424
    %1428 = vset.pattern.permute.xlu0 0
    %1429 = vperm.xlu0 %1428, %v1403
    %v1430 = vpop.permute.xlu0 %1429
    %1433 = vset.pattern.permute.xlu0 0
    %1434 = vperm.xlu0 %1433, %v1404
    %v1435 = vpop.permute.xlu0 %1434
    %1438 = vset.pattern.permute.xlu0 0
    %1439 = vperm.xlu0 %1438, %v1405
    %v1440 = vpop.permute.xlu0 %1439
    %1443 = vset.pattern.permute.xlu0 0
    %1444 = vperm.xlu0 %1443, %v1406
    %v1445 = vpop.permute.xlu0 %1444
    %v1447 = vsel %vm1391, %v1410, 0.0
    %v1448 = vsel %vm1392, %v1415, 0.0
    %v1449 = vsel %vm1393, %v1420, 0.0
    %v1450 = vsel %vm1394, %v1425, 0.0
    %v1451 = vsel %vm1395, %v1430, 0.0
    %v1452 = vsel %vm1396, %v1435, 0.0
    %v1453 = vsel %vm1397, %v1440, 0.0
    %v1454 = vsel %vm1398, %v1445, 0.0
    %1456 = vset.pattern.permute.xlu0 0
    %1457 = vperm.xlu0 %1456, %v1343
    %v1458 = vpop.permute.xlu0 %1457
    %1461 = vset.pattern.permute.xlu0 0
    %1462 = vperm.xlu0 %1461, %v1344
    %v1463 = vpop.permute.xlu0 %1462
    %1466 = vset.pattern.permute.xlu0 0
    %1467 = vperm.xlu0 %1466, %v1345
    %v1468 = vpop.permute.xlu0 %1467
    %1471 = vset.pattern.permute.xlu0 0
    %1472 = vperm.xlu0 %1471, %v1346
    %v1473 = vpop.permute.xlu0 %1472
    %1476 = vset.pattern.permute.xlu0 0
    %1477 = vperm.xlu0 %1476, %v1347
    %v1478 = vpop.permute.xlu0 %1477
    %1481 = vset.pattern.permute.xlu0 0
    %1482 = vperm.xlu0 %1481, %v1348
    %v1483 = vpop.permute.xlu0 %1482
    %1486 = vset.pattern.permute.xlu0 0
    %1487 = vperm.xlu0 %1486, %v1349
    %v1488 = vpop.permute.xlu0 %1487
    %1491 = vset.pattern.permute.xlu0 0
    %1492 = vperm.xlu0 %1491, %v1350
    %v1493 = vpop.permute.xlu0 %1492
    %vm1495 = vcmp.eq.f32.partialorder %v972, %v1458
    %vm1496 = vcmp.eq.f32.partialorder %v972, %v1463
    %vm1497 = vcmp.eq.f32.partialorder %v972, %v1468
    %vm1498 = vcmp.eq.f32.partialorder %v972, %v1473
    %vm1499 = vcmp.eq.f32.partialorder %v972, %v1478
    %vm1500 = vcmp.eq.f32.partialorder %v972, %v1483
    %vm1501 = vcmp.eq.f32.partialorder %v972, %v1488
    %vm1502 = vcmp.eq.f32.partialorder %v972, %v1493
    %1504 = vset.pattern.permute.xlu0 0
    %1505 = vperm.xlu0 %1504, %v1327
    %v1506 = vpop.permute.xlu0 %1505
    %1509 = vset.pattern.permute.xlu0 0
    %1510 = vperm.xlu0 %1509, %v1328
    %v1511 = vpop.permute.xlu0 %1510
    %1514 = vset.pattern.permute.xlu0 0
    %1515 = vperm.xlu0 %1514, %v1329
    %v1516 = vpop.permute.xlu0 %1515
    %1519 = vset.pattern.permute.xlu0 0
    %1520 = vperm.xlu0 %1519, %v1330
    %v1521 = vpop.permute.xlu0 %1520
    %1524 = vset.pattern.permute.xlu0 0
    %1525 = vperm.xlu0 %1524, %v1331
    %v1526 = vpop.permute.xlu0 %1525
    %1529 = vset.pattern.permute.xlu0 0
    %1530 = vperm.xlu0 %1529, %v1332
    %v1531 = vpop.permute.xlu0 %1530
    %1534 = vset.pattern.permute.xlu0 0
    %1535 = vperm.xlu0 %1534, %v1333
    %v1536 = vpop.permute.xlu0 %1535
    %1539 = vset.pattern.permute.xlu0 0
    %1540 = vperm.xlu0 %1539, %v1334
    %v1541 = vpop.permute.xlu0 %1540
    %v1543 = vsel %vm1495, %v1506, 0.0
    %v1544 = vsel %vm1496, %v1511, 0.0
    %v1545 = vsel %vm1497, %v1516, 0.0
    %v1546 = vsel %vm1498, %v1521, 0.0
    %v1547 = vsel %vm1499, %v1526, 0.0
    %v1548 = vsel %vm1500, %v1531, 0.0
    %v1549 = vsel %vm1501, %v1536, 0.0
    %v1550 = vsel %vm1502, %v1541, 0.0
    %v1551 = vadd.f32 %v1447, %v1543
    %v1552 = vadd.f32 %v1448, %v1544
    %v1553 = vadd.f32 %v1449, %v1545
    %v1554 = vadd.f32 %v1450, %v1546
    %v1555 = vadd.f32 %v1451, %v1547
    %v1556 = vadd.f32 %v1452, %v1548
    %v1557 = vadd.f32 %v1453, %v1549
    %v1558 = vadd.f32 %v1454, %v1550
    %vm1559 = vcmask 27648
    %v1560 = vsel %vm1559, %v1551, 0.0
    %v1561 = vrot.slane %v1560, 4
    %v1562 = vadd.f32 %v1560, %v1561
    %v1563 = vrot.slane %v1562, 2
    %v1564 = vadd.f32 %v1562, %v1563
    %v1565 = vrot.slane %v1564, 1
    %v1566 = vadd.f32 %v1564, %v1565
    %v1567 = vsel %vm1559, %v1552, 0.0
    %v1568 = vrot.slane %v1567, 4
    %v1569 = vadd.f32 %v1567, %v1568
    %v1570 = vrot.slane %v1569, 2
    %v1571 = vadd.f32 %v1569, %v1570
    %v1572 = vrot.slane %v1571, 1
    %v1573 = vadd.f32 %v1571, %v1572
    %v1574 = vsel %vm1559, %v1553, 0.0
    %v1575 = vrot.slane %v1574, 4
    %v1576 = vadd.f32 %v1574, %v1575
    %v1577 = vrot.slane %v1576, 2
    %v1578 = vadd.f32 %v1576, %v1577
    %v1579 = vrot.slane %v1578, 1
    %v1580 = vadd.f32 %v1578, %v1579
    %v1581 = vsel %vm1559, %v1554, 0.0
    %v1582 = vrot.slane %v1581, 4
    %v1583 = vadd.f32 %v1581, %v1582
    %v1584 = vrot.slane %v1583, 2
    %v1585 = vadd.f32 %v1583, %v1584
    %v1586 = vrot.slane %v1585, 1
    %v1587 = vadd.f32 %v1585, %v1586
    %v1588 = vsel %vm1559, %v1555, 0.0
    %v1589 = vrot.slane %v1588, 4
    %v1590 = vadd.f32 %v1588, %v1589
    %v1591 = vrot.slane %v1590, 2
    %v1592 = vadd.f32 %v1590, %v1591
    %v1593 = vrot.slane %v1592, 1
    %v1594 = vadd.f32 %v1592, %v1593
    %v1595 = vsel %vm1559, %v1556, 0.0
    %v1596 = vrot.slane %v1595, 4
    %v1597 = vadd.f32 %v1595, %v1596
    %v1598 = vrot.slane %v1597, 2
    %v1599 = vadd.f32 %v1597, %v1598
    %v1600 = vrot.slane %v1599, 1
    %v1601 = vadd.f32 %v1599, %v1600
    %v1602 = vsel %vm1559, %v1557, 0.0
    %v1603 = vrot.slane %v1602, 4
    %v1604 = vadd.f32 %v1602, %v1603
    %v1605 = vrot.slane %v1604, 2
    %v1606 = vadd.f32 %v1604, %v1605
    %v1607 = vrot.slane %v1606, 1
    %v1608 = vadd.f32 %v1606, %v1607
    %v1609 = vsel %vm1559, %v1558, 0.0
    %v1610 = vrot.slane %v1609, 4
    %v1611 = vadd.f32 %v1609, %v1610
    %v1612 = vrot.slane %v1611, 2
    %v1613 = vadd.f32 %v1611, %v1612
    %v1614 = vrot.slane %v1613, 1
    %v1615 = vadd.f32 %v1613, %v1614
    %v1616 = vmul.f32 %v1566, %v1252
    %v1617 = vmul.f32 %v1573, %v1252
    %v1618 = vmul.f32 %v1580, %v1252
    %v1619 = vmul.f32 %v1587, %v1252
    %v1620 = vmul.f32 %v1594, %v1252
    %v1621 = vmul.f32 %v1601, %v1252
    %v1622 = vmul.f32 %v1608, %v1252
    %v1623 = vmul.f32 %v1615, %v1252
    %v1624 = vadd.f32 %v972, 0.5
    %v1625 = vmul.f32 %v1624, 0.25
    %v1626 = vfloor.f32 %v1625
    %v1627 = vmul.f32 %v1626, 4.0
    %v1628 = vsub.f32 %v972, %v1627
    %vm1629 = vcmp.eq.f32.partialorder %v816, %v1626
    %v1630 = vsel %vm1629, 1, 0
    %v1631 = vcvt.s32.f32 %v1630
    %vm1632 = vcmp.eq.f32.partialorder %v816, %v1628
    %v1633 = vsel %vm1632, 1, 0
    %v1634 = vcvt.s32.f32 %v1633
    %v1639 = vsel %vm347, %v1239, %v1238
    %vm1640 = vcmask 1042434
    %v1641 = vsel %vm1640, %v1240, %v1639
    %vm1642 = vcmask 1043459
    %v1643 = vsel %vm1642, %v1241, %v1641
    %v1644 = vsel %vm1181, %v1643, 0
    %1646 = vmatpush.msra.mxu0 0.0
    %1647 = vmatpush.msra.mxu0 0.0
    %1648 = vmatpush.msra.mxu0 0.0
    %1649 = vmatpush.msra.mxu0 0.0
    %1650 = vmatpush.msra.mxu0 0.0
    %1651 = vmatpush.msra.mxu0 0.0
    %1652 = vmatpush.msra.mxu0 0.0
    %1653 = vmatpush.msra.mxu0 0.0
    %1654 = vmatpush.msra.mxu0 0.0
    %1655 = vmatpush.msra.mxu0 0.0
    %1656 = vmatpush.msra.mxu0 0.0
    %1657 = vmatpush.msra.mxu0 0.0
    %1658 = vmatpush.msra.mxu0 0.0
    %1659 = vmatpush.msra.mxu0 0.0
    %1660 = vmatpush.msra.mxu0 0.0
    %1661 = vmatpush.msra.mxu0 %v1631
    %1662 = vmatmul.f32.gmra.mxu0 %v1644
    %v1663 = vpop.f32.mrf.mxu0
    %v1664 = vadd.f32 0.0, %v1663
    %1665 = vdwg.mxu0
    %v1670 = vsel %vm347, %v1243, %v1242
    %v1671 = vsel %vm1640, %v1244, %v1670
    %v1672 = vsel %vm1642, %v1245, %v1671
    %v1673 = vsel %vm1181, %v1672, 0
    %1675 = vmatpush.msra.mxu0 0.0
    %1676 = vmatpush.msra.mxu0 0.0
    %1677 = vmatpush.msra.mxu0 0.0
    %1678 = vmatpush.msra.mxu0 0.0
    %1679 = vmatpush.msra.mxu0 0.0
    %1680 = vmatpush.msra.mxu0 0.0
    %1681 = vmatpush.msra.mxu0 0.0
    %1682 = vmatpush.msra.mxu0 0.0
    %1683 = vmatpush.msra.mxu0 0.0
    %1684 = vmatpush.msra.mxu0 0.0
    %1685 = vmatpush.msra.mxu0 0.0
    %1686 = vmatpush.msra.mxu0 0.0
    %1687 = vmatpush.msra.mxu0 0.0
    %1688 = vmatpush.msra.mxu0 0.0
    %1689 = vmatpush.msra.mxu0 0.0
    %1690 = vmatpush.msra.mxu0 %v1631
    %1691 = vmatmul.f32.gmra.mxu0 %v1673
    %v1692 = vpop.f32.mrf.mxu0
    %v1693 = vadd.f32 0.0, %v1692
    %1694 = vdwg.mxu0
    %v1699 = vsel %vm347, %v1617, %v1616
    %v1700 = vsel %vm1640, %v1618, %v1699
    %v1701 = vsel %vm1642, %v1619, %v1700
    %vm1702 = vcmask 31744
    %v1703 = vsel %vm1702, %v1701, 0
    %vm1705 = vcmask 1043456
    %v1707 = vsel %vm1705, %v1634, 0
    %1709 = vmatpush.msra.mxu0 0.0
    %1710 = vmatpush.msra.mxu0 0.0
    %1711 = vmatpush.msra.mxu0 0.0
    %1712 = vmatpush.msra.mxu0 0.0
    %1713 = vmatpush.msra.mxu0 0.0
    %1714 = vmatpush.msra.mxu0 0.0
    %1715 = vmatpush.msra.mxu0 0.0
    %1716 = vmatpush.msra.mxu0 0.0
    %1717 = vmatpush.msra.mxu0 0.0
    %1718 = vmatpush.msra.mxu0 0.0
    %1719 = vmatpush.msra.mxu0 0.0
    %1720 = vmatpush.msra.mxu0 0.0
    %1721 = vmatpush.msra.mxu0 0.0
    %1722 = vmatpush.msra.mxu0 0.0
    %1723 = vmatpush.msra.mxu0 0.0
    %1724 = vmatpush.msra.mxu0 %v1707
    %1725 = vmatmul.f32.gmra.mxu0 %v1703
    %v1726 = vpop.f32.mrf.mxu0
    %v1727 = vadd.f32 0.0, %v1726
    %1728 = vdwg.mxu0
    %v1733 = vsel %vm347, %v1621, %v1620
    %v1734 = vsel %vm1640, %v1622, %v1733
    %v1735 = vsel %vm1642, %v1623, %v1734
    %v1736 = vsel %vm1702, %v1735, 0
    %1738 = vmatpush.msra.mxu0 0.0
    %1739 = vmatpush.msra.mxu0 0.0
    %1740 = vmatpush.msra.mxu0 0.0
    %1741 = vmatpush.msra.mxu0 0.0
    %1742 = vmatpush.msra.mxu0 0.0
    %1743 = vmatpush.msra.mxu0 0.0
    %1744 = vmatpush.msra.mxu0 0.0
    %1745 = vmatpush.msra.mxu0 0.0
    %1746 = vmatpush.msra.mxu0 0.0
    %1747 = vmatpush.msra.mxu0 0.0
    %1748 = vmatpush.msra.mxu0 0.0
    %1749 = vmatpush.msra.mxu0 0.0
    %1750 = vmatpush.msra.mxu0 0.0
    %1751 = vmatpush.msra.mxu0 0.0
    %1752 = vmatpush.msra.mxu0 0.0
    %1753 = vmatpush.msra.mxu0 %v1707
    %1754 = vmatmul.f32.gmra.mxu0 %v1736
    %v1755 = vpop.f32.mrf.mxu0
    %v1756 = vadd.f32 0.0, %v1755
    %1757 = vdwg.mxu0
    %v1758 = vmul.f32 %v1664, %v1727
    %v1759 = vmul.f32 %v1693, %v1756
    %v1761 = vsel %vm65, %v1758, 0
    %v1764 = vsel %vm65, %v33, 0
    %v1767 = vsel %vm65, %v34, 0
    %v1770 = vsel %vm65, %v35, 0
    %v1773 = vsel %vm65, %v36, 0
    %v1776 = vsel %vm65, %v37, 0
    %v1779 = vsel %vm65, %v38, 0
    %v1782 = vsel %vm65, %v39, 0
    %v1785 = vsel %vm65, %v40, 0
    %v1788 = vsel %vm65, %v41, 0
    %v1791 = vsel %vm65, %v42, 0
    %v1794 = vsel %vm65, %v43, 0
    %v1797 = vsel %vm65, %v44, 0
    %v1800 = vsel %vm65, %v45, 0
    %v1803 = vsel %vm65, %v46, 0
    %v1806 = vsel %vm65, %v47, 0
    %v1809 = vsel %vm65, %v48, 0
    %1811 = vmatpush.xpose.msra.mxu0 %v1809
    %1812 = vmatpush.xpose.msra.mxu0 %v1806
    %1813 = vmatpush.xpose.msra.mxu0 %v1803
    %1814 = vmatpush.xpose.msra.mxu0 %v1800
    %1815 = vmatpush.xpose.msra.mxu0 %v1797
    %1816 = vmatpush.xpose.msra.mxu0 %v1794
    %1817 = vmatpush.xpose.msra.mxu0 %v1791
    %1818 = vmatpush.xpose.msra.mxu0 %v1788
    %1819 = vmatpush.xpose.msra.mxu0 %v1785
    %1820 = vmatpush.xpose.msra.mxu0 %v1782
    %1821 = vmatpush.xpose.msra.mxu0 %v1779
    %1822 = vmatpush.xpose.msra.mxu0 %v1776
    %1823 = vmatpush.xpose.msra.mxu0 %v1773
    %1824 = vmatpush.xpose.msra.mxu0 %v1770
    %1825 = vmatpush.xpose.msra.mxu0 %v1767
    %1826 = vmatpush.xpose.msra.mxu0 %v1764
    %1827 = vmatmul.f32.gmra.mxu0 %v1761
    %v1828 = vpop.f32.mrf.mxu0
    %v1829 = vadd.f32 0.0, %v1828
    %1830 = vdwg.mxu0
    %v1832 = vsel %vm65, %v1759, 0
    %v1835 = vsel %vm65, %v49, 0
    %v1838 = vsel %vm65, %v50, 0
    %v1841 = vsel %vm65, %v51, 0
    %v1844 = vsel %vm65, %v52, 0
    %v1847 = vsel %vm65, %v53, 0
    %v1850 = vsel %vm65, %v54, 0
    %v1853 = vsel %vm65, %v55, 0
    %v1856 = vsel %vm65, %v56, 0
    %v1859 = vsel %vm65, %v57, 0
    %v1862 = vsel %vm65, %v58, 0
    %v1865 = vsel %vm65, %v59, 0
    %v1868 = vsel %vm65, %v60, 0
    %v1871 = vsel %vm65, %v61, 0
    %v1874 = vsel %vm65, %v62, 0
    %v1877 = vsel %vm65, %v63, 0
    %v1880 = vsel %vm65, %v64, 0
    %1882 = vmatpush.xpose.msra.mxu0 %v1880
    %1883 = vmatpush.xpose.msra.mxu0 %v1877
    %1884 = vmatpush.xpose.msra.mxu0 %v1874
    %1885 = vmatpush.xpose.msra.mxu0 %v1871
    %1886 = vmatpush.xpose.msra.mxu0 %v1868
    %1887 = vmatpush.xpose.msra.mxu0 %v1865
    %1888 = vmatpush.xpose.msra.mxu0 %v1862
    %1889 = vmatpush.xpose.msra.mxu0 %v1859
    %1890 = vmatpush.xpose.msra.mxu0 %v1856
    %1891 = vmatpush.xpose.msra.mxu0 %v1853
    %1892 = vmatpush.xpose.msra.mxu0 %v1850
    %1893 = vmatpush.xpose.msra.mxu0 %v1847
    %1894 = vmatpush.xpose.msra.mxu0 %v1844
    %1895 = vmatpush.xpose.msra.mxu0 %v1841
    %1896 = vmatpush.xpose.msra.mxu0 %v1838
    %1897 = vmatpush.xpose.msra.mxu0 %v1835
    %1898 = vmatmul.f32.gmra.mxu0 %v1832
    %v1899 = vpop.f32.mrf.mxu0
    %v1900 = vadd.f32 0.0, %v1899
    %1901 = vdwg.mxu0
    %v1902 = vadd.f32 %v740, 1.0
    %v1903 = vadd.f32 %v741, 1.0
    %v1904 = vld [vmem:[%s7] sm:$0xf]
    %v1905 = vmul.f32 %v1902, %v1904
    %v1906 = vmul.f32 %v1903, %v1904
    %v1907 = vmul.f32 %v1829, %v1905
    %v1908 = vmul.f32 %v1900, %v1906
    %v1909 = vsel %vm1705, %v1907, 0.0
    %1910 = vadd.xlane.f32.xlu0 %v1909
    %v1911 = vpop.xlane.xlu0 %1910
    %v1912 = vsel %vm1705, %v1908, 0.0
    %1913 = vadd.xlane.f32.xlu0 %v1912
    %v1914 = vpop.xlane.xlu0 %1913
    %v1915 = vld [vmem:[%s8] sm:$0x1]
    %v1917 = vperm.slane %v1915, 0
    %v1918 = vlaneseq
    %v1919 = vshrl.u32 %v1918, 7
    %1921 = vset.pattern.permute.xlu0 %v1919
    %1922 = vperm.xlu0 %1921, %v1917
    %v1923 = vpop.permute.xlu0 %1922
    %v1925 = vadd.f32 %v1911, %v1923
    %v1926 = vadd.f32 %v1914, %v1923
    %1929 = vset.pattern.permute.xlu0 0
    %1930 = vperm.xlu0 %1929, %v1925
    %v1931 = vpop.permute.xlu0 %1930
    %1932 = vset.pattern.permute.xlu0 0
    %1933 = vperm.xlu0 %1932, %v1926
    %v1934 = vpop.permute.xlu0 %1933
    %v1935 = vperm.slane %v1931, %v254
    %v1936 = vperm.slane %v1934, %v254
    %v1937 = vsel %vm347, %v1936, %v1935
    %vm1939 = vcmask 25600
    %1940 = vst.msk [vmem:[#allocation2] sm:$0x3] %vm1939, %v1937
    // Predicated region
    $region38: #{tpu_custom_call.1} parent=1 // pred_check
      _
    $region39: #{tpu_custom_call.1} parent=1 // pred_check_branch
      %1942 = sbr.rel (0) target = $region41
    $region40: #{tpu_custom_call.1} parent=1 // pred_region
      %1944 = vsyncadd [#allocation3], 0
      %s1946 = sshll.u32 [#allocation2], 4
      %s1947 = int_to_ptr.vmem [resolvable:$true] %s1946
      %s1948 = sshll.u32 %s9, 4
      %s1949 = int_to_ptr.hbm [resolvable:$true] %s1948
      %1951 = dma.vmem_to_hbm [thread:$0]  %s1947, 32, %s1949, [#allocation3]
    $region41: #{tpu_custom_call.1} parent=1 // pred_fallthru
      _
    // Predicated region
    $region42: #{tpu_custom_call.1} parent=1 // pred_check
      _
    $region43: #{tpu_custom_call.1} parent=1 // pred_check_branch
      %1953 = sbr.rel (0) target = $region45
    $region44: #{tpu_custom_call.1} parent=1 // pred_region
      %1955 = dma.done [#allocation3], 32
    $region45: #{tpu_custom_call.1} parent=1 // pred_fallthru
      _
    %1956 = vsyncpa [#allocation3], 1

</llo_original>
